<compile_context>
chip_gen: v7x
topology: tpu7x:2x2x1
jax: 0.10.0
libtpu: 0.0.40
codegen_flags: <defaults>
</compile_context>

<pallas_src>
import functools

import numpy as np
import jax
import jax.numpy as jnp
from jax import lax
from jax.experimental import pallas as pl
from jax.experimental.pallas import tpu as pltpu


# ----------------------------- fused DoubleConv kernel ------------------------

def _double_conv_kernel(xg_ref, mask_ref, w1_ref, g1_ref, be1_ref,
                        w2_ref, g2_ref, be2_ref,
                        o_ref, patch_ref, ybuf_ref, *, N, H, W, G, S1, S2):
    """Fused (conv3x3 => BN(train) => ReLU) * 2 in channel-major flat layout.

    xg_ref   : (Cin, L)    bf16  zero-guarded padded-grid input, L = M + 2*G
    mask_ref : (1, M)      f32   1.0 on valid (non-ring) pixels of the flat grid
    w1_ref   : (Cout, 9*S1) bf16 conv1 weights, column = tap*S1 + in_channel
    g1/be1   : (Cout, 1)   f32   BN1 gamma / beta
    w2_ref   : (Cout, 9*S2) bf16 conv2 weights
    g2/be2   : (Cout, 1)   f32
    o_ref    : (Cout, M)   f32   output on the padded grid (interior is valid)
    patch_ref: (9*Smax, M) bf16  im2col scratch, per-layer row stride S1 / S2
    ybuf_ref : (Cout, L)   bf16  zero-guarded layer-1 activation (stays in VMEM)
    """
    Hp, Wp = H + 2, W + 2
    M = N * Hp * Wp
    inv_count = 1.0 / float(N * H * W)
    mask = mask_ref[...]                                   # (1, M) f32

    # A 3x3 tap (dh, dw) is a constant shift of dh*Wp + dw on the flat grid.
    shifts = [dh * Wp + dw for dh in (-1, 0, 1) for dw in (-1, 0, 1)]

    C1 = xg_ref.shape[0]
    C2 = ybuf_ref.shape[0]

    # Dead (zero-weight) K rows of the im2col scratch must be finite so that
    # uninitialized-VMEM NaNs can't poison `0 * x` in the matmul; zero once.
    if (C1 < S1) or (C2 < S2):
        patch_ref[...] = jnp.zeros_like(patch_ref)

    def conv_bn_relu(src_ref, w_ref_, g_ref_, be_ref_, stride):
        cin = src_ref.shape[0]
        # im2col into the bf16 VMEM scratch: one static contiguous copy per
        # tap, live rows only (row offset t*stride is 16-sublane aligned).
        # TODO(synk): the 8 lane-misaligned tap slices are XLU work; at large
        # shapes consider deriving dw=+/-1 taps from the 3 row-shifted blocks.
        for t, s in enumerate(shifts):
            patch_ref[t * stride:t * stride + cin, :] = src_ref[:, G + s:G + s + M]
        # Single MXU matmul, K = 9*stride, bf16 x bf16, f32 accumulation.
        acc = jnp.dot(w_ref_[...], patch_ref[:9 * stride, :],
                      preferred_element_type=jnp.float32)            # (Cout, M)
        # BatchNorm2d training-mode (biased) batch stats over valid pixels,
        # single pass: var = E[x^2] - E[x]^2.  (Conv bias is omitted -- it
        # cancels exactly in the mean subtraction.)
        am = acc * mask
        s1 = jnp.sum(am, axis=1, keepdims=True)
        s2 = jnp.sum(acc * am, axis=1, keepdims=True)
        mean = s1 * inv_count
        var = s2 * inv_count - mean * mean
        y = (acc - mean) * lax.rsqrt(var + 1e-5) * g_ref_[...] + be_ref_[...]
        return jnp.maximum(y, 0.0)                                    # ReLU

    y1 = conv_bn_relu(xg_ref, w1_ref, g1_ref, be1_ref, S1)

    # Layer-1 activation never touches HBM: stage it into a zero-guarded bf16
    # VMEM buffer.  Only the guard strips are zeroed (interior is overwritten);
    # the mask multiply restores the zero padding ring for layer 2.
    zguard = jnp.zeros((C2, G), ybuf_ref.dtype)
    ybuf_ref[:, 0:G] = zguard
    ybuf_ref[:, G + M:G + M + G] = zguard
    ybuf_ref[:, G:G + M] = (y1 * mask).astype(ybuf_ref.dtype)

    y2 = conv_bn_relu(ybuf_ref, w2_ref, g2_ref, be2_ref, S2)
    o_ref[...] = y2


def double_conv_pallas(x_nchw, p):
    """Fused DoubleConv on an NCHW input via a single pallas_call (NCHW out)."""
    x = x_nchw.astype(jnp.float32)
    N, Cin, H, W = x.shape
    Cout = p['w1'].shape[-1]
    Hp, Wp = H + 2, W + 2
    M = N * Hp * Wp
    # Guard width: >= max tap shift (Wp+1), rounded to 128 so the in-kernel
    # interior store is lane-aligned.
    G = ((Wp + 1 + 127) // 128) * 128
    L = M + 2 * G
    # Per-layer im2col row strides, 16-aligned for bf16 (16,128) sublane tiles.
    S1 = ((Cin + 15) // 16) * 16
    S2 = ((Cout + 15) // 16) * 16
    Smax = max(S1, S2)

    # Channel-major, zero-guarded, flattened padded-grid input (layout glue).
    xp = jnp.pad(x, ((0, 0), (0, 0), (1, 1), (1, 1)))            # (N,Cin,Hp,Wp)
    xg = jnp.transpose(xp, (1, 0, 2, 3)).reshape(Cin, M)
    xg = jnp.pad(xg, ((0, 0), (G, G))).astype(jnp.bfloat16)      # (Cin, L)

    # Validity mask over the flattened padded grid (trace-time constant).
    q = np.arange(M)
    row = (q // Wp) % Hp
    col = q % Wp
    mask_np = ((row >= 1) & (row <= H) & (col >= 1) & (col <= W))
    mask = jnp.asarray(mask_np.reshape(1, M).astype(np.float32))

    def prep_w(w_hwio, stride):  # (3,3,ci,co) -> (co, 9*stride), col = tap*stride+ci
        kh, kw, ci, co = w_hwio.shape
        w = jnp.transpose(w_hwio, (3, 0, 1, 2)).reshape(co, kh * kw, ci)
        w = jnp.pad(w, ((0, 0), (0, 0), (0, stride - ci)))
        return w.reshape(co, kh * kw * stride).astype(jnp.bfloat16)

    def prep_v(v):               # per-channel vector -> (Cout, 1) for lane broadcast
        return v.reshape(-1, 1).astype(jnp.float32)

    args = (xg, mask,
            prep_w(p['w1'], S1), prep_v(p['g1']), prep_v(p['be1']),
            prep_w(p['w2'], S2), prep_v(p['g2']), prep_v(p['be2']))

    vmem = pl.BlockSpec(memory_space=pltpu.MemorySpace.VMEM)
    flops = 2 * M * Cout * 9 * (S1 + S2)
    bytes_accessed = (Cin * L * 2 + M * 4 + Cout * 9 * (S1 + S2) * 2
                      + 4 * Cout * 4 + Cout * M * 4)

    # TODO(synk): for realistic UNet feature-map sizes, grid over N/row-blocks
    # of the flat spatial axis with a +2-row halo and a two-pass / cross-block
    # BN accumulator, mark the axis "parallel" (2 TensorCores on v7x), retile M
    # to fit v7x's 64 MiB VMEM, and raise vmem_limit_bytes accordingly; at
    # these toy shapes one block is optimal.
    out = pl.pallas_call(
        functools.partial(_double_conv_kernel, N=N, H=H, W=W, G=G, S1=S1, S2=S2),
        out_shape=jax.ShapeDtypeStruct((Cout, M), jnp.float32),
        in_specs=[vmem] * 8,
        out_specs=vmem,
        scratch_shapes=[pltpu.VMEM((9 * Smax, M), jnp.bfloat16),
                        pltpu.VMEM((Cout, L), jnp.bfloat16)],
        compiler_params=pltpu.CompilerParams(vmem_limit_bytes=32 * 1024 * 1024),
        cost_estimate=pl.CostEstimate(flops=flops, transcendentals=4 * Cout,
                                      bytes_accessed=bytes_accessed),
    )(*args)

    # Drop the padding ring and return NCHW.
    out = out.reshape(Cout, N, Hp, Wp)[:, :, 1:H + 1, 1:W + 1]
    return jnp.transpose(out, (1, 0, 2, 3))


# ------------------------------- JAX glue -------------------------------------

def _bilinear_matrix(n_in, n_out):
    """Row-stochastic 1-D linear resize matrix, align_corners=True."""
    if n_out == 1 or n_in == 1:
        m = np.zeros((n_out, n_in), np.float32)
        m[:, 0] = 1.0
        return m
    src = np.arange(n_out, dtype=np.float64) * (n_in - 1) / (n_out - 1)
    i0 = np.clip(np.floor(src).astype(np.int64), 0, n_in - 1)
    i1 = np.minimum(i0 + 1, n_in - 1)
    f = (src - i0).astype(np.float32)
    m = np.zeros((n_out, n_in), np.float32)
    m[np.arange(n_out), i0] += 1.0 - f
    m[np.arange(n_out), i1] += f
    return m


def bilinear_up2x_align_corners(x_nchw):
    """nn.Upsample(scale_factor=2, mode='bilinear', align_corners=True), NCHW."""
    N, C, H, W = x_nchw.shape
    My = jnp.asarray(_bilinear_matrix(H, 2 * H))   # (2H, H)
    Mx = jnp.asarray(_bilinear_matrix(W, 2 * W))   # (2W, W)
    t = jnp.einsum('oh,nchw->ncow', My, x_nchw)
    return jnp.einsum('pw,ncow->ncop', Mx, t)


def up_preprocess(x1_nchw, x2_nchw):
    """upsample x1, F.pad to x2 spatial size, concat channels (NCHW)."""
    x1 = bilinear_up2x_align_corners(x1_nchw)
    diffY = x2_nchw.shape[2] - x1.shape[2]
    diffX = x2_nchw.shape[3] - x1.shape[3]
    x1 = jnp.pad(x1, ((0, 0), (0, 0),
                      (diffY // 2, diffY - diffY // 2),
                      (diffX // 2, diffX - diffX // 2)))
    return jnp.concatenate([x2_nchw, x1], axis=1)  # torch.cat([x2, x1], dim=1)


def up_forward(x1_nchw, x2_nchw, params):
    """Full Up.forward. Takes/returns NCHW like the PyTorch module."""
    x = up_preprocess(x1_nchw.astype(jnp.float32), x2_nchw.astype(jnp.float32))
    return double_conv_pallas(x, params)


# --------------------------- pure-JAX reference --------------------------------

def _ref_conv_bn_relu(x, w_hwio, b, g, be):
    co = w_hwio.shape[-1]
    y = lax.conv_general_dilated(
        x, w_hwio, (1, 1), 'SAME',
        dimension_numbers=('NCHW', 'HWIO', 'NCHW'),
        precision=lax.Precision.HIGHEST) + b.reshape(1, co, 1, 1)
    mean = jnp.mean(y, axis=(0, 2, 3), keepdims=True)
    var = jnp.mean((y - mean) ** 2, axis=(0, 2, 3), keepdims=True)
    yh = (y - mean) * lax.rsqrt(var + 1e-5)
    return jnp.maximum(yh * g.reshape(1, co, 1, 1) + be.reshape(1, co, 1, 1), 0.0)


def double_conv_ref(x_nchw, p):
    y = _ref_conv_bn_relu(x_nchw, p['w1'], p['b1'], p['g1'], p['be1'])
    return _ref_conv_bn_relu(y, p['w2'], p['b2'], p['g2'], p['be2'])


# ----------------------------------- main --------------------------------------

if __name__ == "__main__":
    key = jax.random.PRNGKey(0)
    ks = jax.random.split(key, 12)

    # Up(in_channels=8, out_channels=4, bilinear=True)
    in_channels, out_channels = 8, 4
    N = 2
    # x1: deeper feature map (half spatial), x2: skip connection.
    x1 = jax.random.normal(ks[0], (N, in_channels // 2, 8, 8), jnp.float32)    # NCHW
    x2 = jax.random.normal(ks[1], (N, in_channels // 2, 16, 16), jnp.float32)  # NCHW

    def conv_params(kw_key, kb_key, cin, cout):
        bound = 1.0 / np.sqrt(cin * 9)
        w = jax.random.uniform(kw_key, (3, 3, cin, cout), jnp.float32, -bound, bound)
        b = jax.random.uniform(kb_key, (cout,), jnp.float32, -bound, bound)
        return w, b

    w1, b1 = conv_params(ks[2], ks[3], in_channels, out_channels)
    w2, b2 = conv_params(ks[4], ks[5], out_channels, out_channels)
    params = dict(
        w1=w1, b1=b1,
        g1=1.0 + 0.1 * jax.random.normal(ks[6], (out_channels,), jnp.float32),
        be1=0.1 * jax.random.normal(ks[7], (out_channels,), jnp.float32),
        w2=w2, b2=b2,
        g2=1.0 + 0.1 * jax.random.normal(ks[8], (out_channels,), jnp.float32),
        be2=0.1 * jax.random.normal(ks[9], (out_channels,), jnp.float32),
    )

    out = jax.block_until_ready(up_forward(x1, x2, params))
    assert out.shape == (N, out_channels, 16, 16), out.shape

    # Correctness: Pallas fused DoubleConv (bias-free, it cancels in BN) vs a
    # pure-JAX f32(HIGHEST) reference that keeps the conv bias.
    x_cat = up_preprocess(x1, x2)
    ref = jax.block_until_ready(double_conv_ref(x_cat, params))
    err = float(jnp.max(jnp.abs(out - ref)))
    # bf16 MXU inputs with f32 accumulation vs an f32 reference: allow ~1e-2.
    if not np.allclose(np.asarray(out), np.asarray(ref), atol=3e-2, rtol=3e-2):
        raise AssertionError(f"Pallas Up kernel mismatch, max abs err = {err}")

    print("KERNEL_OK")
</pallas_src>

<mosaic_0001>
module attributes {stable_mosaic.version = 11 : i64} {
  func.func @_double_conv_kernel(%arg0: memref<8x904xbf16, #tpu.memory_space<vmem>>, %arg1: memref<1x648xf32, #tpu.memory_space<vmem>>, %arg2: memref<4x144xbf16, #tpu.memory_space<vmem>>, %arg3: memref<4x1xf32, #tpu.memory_space<vmem>>, %arg4: memref<4x1xf32, #tpu.memory_space<vmem>>, %arg5: memref<4x144xbf16, #tpu.memory_space<vmem>>, %arg6: memref<4x1xf32, #tpu.memory_space<vmem>>, %arg7: memref<4x1xf32, #tpu.memory_space<vmem>>, %arg8: memref<4x648xf32, #tpu.memory_space<vmem>>, %arg9: memref<144x648xbf16, #tpu.memory_space<vmem>>, %arg10: memref<4x904xbf16, #tpu.memory_space<vmem>>) attributes {dimension_semantics = [], scalar_prefetch = 0 : i64, scratch_operands = 2 : i64, tpu.core_type = #tpu.core_type<tc>} {
    %c0 = arith.constant 0 : index
    %c0_0 = arith.constant 0 : index
    %0 = vector.load %arg1[%c0, %c0_0] : memref<1x648xf32, #tpu.memory_space<vmem>>, vector<1x648xf32>
    %cst = arith.constant 0.000000e+00 : bf16
    %1 = vector.broadcast %cst : bf16 to vector<144x648xbf16>
    %c0_1 = arith.constant 0 : index
    %c0_2 = arith.constant 0 : index
    %2 = vector.load %arg9[%c0_1, %c0_2] : memref<144x648xbf16, #tpu.memory_space<vmem>>, vector<144x648xbf16>
    tpu.vector_store %arg9[%c0_1, %c0_2], %1 {strides = array<i32>} : memref<144x648xbf16, #tpu.memory_space<vmem>>, vector<144x648xbf16>,
    %c0_3 = arith.constant 0 : index
    %c109 = arith.constant 109 : index
    %3 = vector.load %arg0[%c0_3, %c109] : memref<8x904xbf16, #tpu.memory_space<vmem>>, vector<8x648xbf16>
    %c0_4 = arith.constant 0 : index
    %c0_5 = arith.constant 0 : index
    %4 = vector.load %arg9[%c0_4, %c0_5] : memref<144x648xbf16, #tpu.memory_space<vmem>>, vector<8x648xbf16>
    tpu.vector_store %arg9[%c0_4, %c0_5], %3 {strides = array<i32>} : memref<144x648xbf16, #tpu.memory_space<vmem>>, vector<8x648xbf16>,
    %c0_6 = arith.constant 0 : index
    %c110 = arith.constant 110 : index
    %5 = vector.load %arg0[%c0_6, %c110] : memref<8x904xbf16, #tpu.memory_space<vmem>>, vector<8x648xbf16>
    %c16 = arith.constant 16 : index
    %c0_7 = arith.constant 0 : index
    %6 = vector.load %arg9[%c16, %c0_7] : memref<144x648xbf16, #tpu.memory_space<vmem>>, vector<8x648xbf16>
    tpu.vector_store %arg9[%c16, %c0_7], %5 {strides = array<i32>} : memref<144x648xbf16, #tpu.memory_space<vmem>>, vector<8x648xbf16>,
    %c0_8 = arith.constant 0 : index
    %c111 = arith.constant 111 : index
    %7 = vector.load %arg0[%c0_8, %c111] : memref<8x904xbf16, #tpu.memory_space<vmem>>, vector<8x648xbf16>
    %c32 = arith.constant 32 : index
    %c0_9 = arith.constant 0 : index
    %8 = vector.load %arg9[%c32, %c0_9] : memref<144x648xbf16, #tpu.memory_space<vmem>>, vector<8x648xbf16>
    tpu.vector_store %arg9[%c32, %c0_9], %7 {strides = array<i32>} : memref<144x648xbf16, #tpu.memory_space<vmem>>, vector<8x648xbf16>,
    %c0_10 = arith.constant 0 : index
    %c127 = arith.constant 127 : index
    %9 = vector.load %arg0[%c0_10, %c127] : memref<8x904xbf16, #tpu.memory_space<vmem>>, vector<8x648xbf16>
    %c48 = arith.constant 48 : index
    %c0_11 = arith.constant 0 : index
    %10 = vector.load %arg9[%c48, %c0_11] : memref<144x648xbf16, #tpu.memory_space<vmem>>, vector<8x648xbf16>
    tpu.vector_store %arg9[%c48, %c0_11], %9 {strides = array<i32>} : memref<144x648xbf16, #tpu.memory_space<vmem>>, vector<8x648xbf16>,
    %c0_12 = arith.constant 0 : index
    %c128 = arith.constant 128 : index
    %11 = vector.load %arg0[%c0_12, %c128] : memref<8x904xbf16, #tpu.memory_space<vmem>>, vector<8x648xbf16>
    %c64 = arith.constant 64 : index
    %c0_13 = arith.constant 0 : index
    %12 = vector.load %arg9[%c64, %c0_13] : memref<144x648xbf16, #tpu.memory_space<vmem>>, vector<8x648xbf16>
    tpu.vector_store %arg9[%c64, %c0_13], %11 {strides = array<i32>} : memref<144x648xbf16, #tpu.memory_space<vmem>>, vector<8x648xbf16>,
    %c0_14 = arith.constant 0 : index
    %c129 = arith.constant 129 : index
    %13 = vector.load %arg0[%c0_14, %c129] : memref<8x904xbf16, #tpu.memory_space<vmem>>, vector<8x648xbf16>
    %c80 = arith.constant 80 : index
    %c0_15 = arith.constant 0 : index
    %14 = vector.load %arg9[%c80, %c0_15] : memref<144x648xbf16, #tpu.memory_space<vmem>>, vector<8x648xbf16>
    tpu.vector_store %arg9[%c80, %c0_15], %13 {strides = array<i32>} : memref<144x648xbf16, #tpu.memory_space<vmem>>, vector<8x648xbf16>,
    %c0_16 = arith.constant 0 : index
    %c145 = arith.constant 145 : index
    %15 = vector.load %arg0[%c0_16, %c145] : memref<8x904xbf16, #tpu.memory_space<vmem>>, vector<8x648xbf16>
    %c96 = arith.constant 96 : index
    %c0_17 = arith.constant 0 : index
    %16 = vector.load %arg9[%c96, %c0_17] : memref<144x648xbf16, #tpu.memory_space<vmem>>, vector<8x648xbf16>
    tpu.vector_store %arg9[%c96, %c0_17], %15 {strides = array<i32>} : memref<144x648xbf16, #tpu.memory_space<vmem>>, vector<8x648xbf16>,
    %c0_18 = arith.constant 0 : index
    %c146 = arith.constant 146 : index
    %17 = vector.load %arg0[%c0_18, %c146] : memref<8x904xbf16, #tpu.memory_space<vmem>>, vector<8x648xbf16>
    %c112 = arith.constant 112 : index
    %c0_19 = arith.constant 0 : index
    %18 = vector.load %arg9[%c112, %c0_19] : memref<144x648xbf16, #tpu.memory_space<vmem>>, vector<8x648xbf16>
    tpu.vector_store %arg9[%c112, %c0_19], %17 {strides = array<i32>} : memref<144x648xbf16, #tpu.memory_space<vmem>>, vector<8x648xbf16>,
    %c0_20 = arith.constant 0 : index
    %c147 = arith.constant 147 : index
    %19 = vector.load %arg0[%c0_20, %c147] : memref<8x904xbf16, #tpu.memory_space<vmem>>, vector<8x648xbf16>
    %c128_21 = arith.constant 128 : index
    %c0_22 = arith.constant 0 : index
    %20 = vector.load %arg9[%c128_21, %c0_22] : memref<144x648xbf16, #tpu.memory_space<vmem>>, vector<8x648xbf16>
    tpu.vector_store %arg9[%c128_21, %c0_22], %19 {strides = array<i32>} : memref<144x648xbf16, #tpu.memory_space<vmem>>, vector<8x648xbf16>,
    %c0_23 = arith.constant 0 : index
    %c0_24 = arith.constant 0 : index
    %21 = vector.load %arg2[%c0_23, %c0_24] : memref<4x144xbf16, #tpu.memory_space<vmem>>, vector<4x144xbf16>
    %c0_25 = arith.constant 0 : index
    %c0_26 = arith.constant 0 : index
    %22 = vector.load %arg9[%c0_25, %c0_26] : memref<144x648xbf16, #tpu.memory_space<vmem>>, vector<144x648xbf16>
    %cst_27 = arith.constant dense<0.000000e+00> : vector<4x648xf32>
    %23 = tpu.matmul %21, %22, %cst_27 {dimension_numbers = #tpu.dot_dimension_numbers<[1], [0], [0], [1], [0, 0, 1, 1], [], []>} : vector<4x144xbf16>, vector<144x648xbf16>, vector<4x648xf32> -> vector<4x648xf32>
    %24 = vector.broadcast %0 : vector<1x648xf32> to vector<4x648xf32>
    %25 = arith.mulf %23, %24 : vector<4x648xf32>
    %cst_28 = arith.constant dense<0.000000e+00> : vector<4xf32>
    %26 = vector.multi_reduction <add>, %25, %cst_28 [1] : vector<4x648xf32> to vector<4xf32>
    %27 = vector.shape_cast %26 : vector<4xf32> to vector<4x1xf32>
    %28 = arith.mulf %23, %25 : vector<4x648xf32>
    %cst_29 = arith.constant dense<0.000000e+00> : vector<4xf32>
    %29 = vector.multi_reduction <add>, %28, %cst_29 [1] : vector<4x648xf32> to vector<4xf32>
    %30 = vector.shape_cast %29 : vector<4xf32> to vector<4x1xf32>
    %cst_30 = arith.constant 0.001953125 : f32
    %31 = vector.broadcast %cst_30 : f32 to vector<4x1xf32>
    %32 = arith.mulf %27, %31 : vector<4x1xf32>
    %cst_31 = arith.constant 0.001953125 : f32
    %33 = vector.broadcast %cst_31 : f32 to vector<4x1xf32>
    %34 = arith.mulf %30, %33 : vector<4x1xf32>
    %35 = arith.mulf %32, %32 : vector<4x1xf32>
    %36 = arith.subf %34, %35 : vector<4x1xf32>
    %37 = vector.broadcast %32 : vector<4x1xf32> to vector<4x648xf32>
    %38 = arith.subf %23, %37 : vector<4x648xf32>
    %cst_32 = arith.constant 9.99999974E-6 : f32
    %39 = vector.broadcast %cst_32 : f32 to vector<4x1xf32>
    %40 = arith.addf %36, %39 : vector<4x1xf32>
    %41 = math.rsqrt %40 : vector<4x1xf32>
    %42 = vector.broadcast %41 : vector<4x1xf32> to vector<4x648xf32>
    %43 = arith.mulf %38, %42 : vector<4x648xf32>
    %c0_33 = arith.constant 0 : index
    %c0_34 = arith.constant 0 : index
    %44 = vector.load %arg3[%c0_33, %c0_34] : memref<4x1xf32, #tpu.memory_space<vmem>>, vector<4x1xf32>
    %45 = vector.broadcast %44 : vector<4x1xf32> to vector<4x648xf32>
    %46 = arith.mulf %43, %45 : vector<4x648xf32>
    %c0_35 = arith.constant 0 : index
    %c0_36 = arith.constant 0 : index
    %47 = vector.load %arg4[%c0_35, %c0_36] : memref<4x1xf32, #tpu.memory_space<vmem>>, vector<4x1xf32>
    %48 = vector.broadcast %47 : vector<4x1xf32> to vector<4x648xf32>
    %49 = arith.addf %46, %48 : vector<4x648xf32>
    %cst_37 = arith.constant 0.000000e+00 : f32
    %50 = vector.broadcast %cst_37 : f32 to vector<4x648xf32>
    %51 = arith.maximumf %49, %50 : vector<4x648xf32>
    %cst_38 = arith.constant 0.000000e+00 : bf16
    %52 = vector.broadcast %cst_38 : bf16 to vector<4x128xbf16>
    %c0_39 = arith.constant 0 : index
    %c0_40 = arith.constant 0 : index
    %53 = vector.load %arg10[%c0_39, %c0_40] : memref<4x904xbf16, #tpu.memory_space<vmem>>, vector<4x128xbf16>
    tpu.vector_store %arg10[%c0_39, %c0_40], %52 {strides = array<i32>} : memref<4x904xbf16, #tpu.memory_space<vmem>>, vector<4x128xbf16>,
    %c0_41 = arith.constant 0 : index
    %c776 = arith.constant 776 : index
    %54 = vector.load %arg10[%c0_41, %c776] : memref<4x904xbf16, #tpu.memory_space<vmem>>, vector<4x128xbf16>
    tpu.vector_store %arg10[%c0_41, %c776], %52 {strides = array<i32>} : memref<4x904xbf16, #tpu.memory_space<vmem>>, vector<4x128xbf16>,
    %55 = vector.broadcast %0 : vector<1x648xf32> to vector<4x648xf32>
    %56 = arith.mulf %51, %55 : vector<4x648xf32>
    %57 = arith.truncf %56 : vector<4x648xf32> to vector<4x648xbf16>
    %c0_42 = arith.constant 0 : index
    %c128_43 = arith.constant 128 : index
    %58 = vector.load %arg10[%c0_42, %c128_43] : memref<4x904xbf16, #tpu.memory_space<vmem>>, vector<4x648xbf16>
    tpu.vector_store %arg10[%c0_42, %c128_43], %57 {strides = array<i32>} : memref<4x904xbf16, #tpu.memory_space<vmem>>, vector<4x648xbf16>,
    %c0_44 = arith.constant 0 : index
    %c109_45 = arith.constant 109 : index
    %59 = vector.load %arg10[%c0_44, %c109_45] : memref<4x904xbf16, #tpu.memory_space<vmem>>, vector<4x648xbf16>
    %c0_46 = arith.constant 0 : index
    %c0_47 = arith.constant 0 : index
    %60 = vector.load %arg9[%c0_46, %c0_47] : memref<144x648xbf16, #tpu.memory_space<vmem>>, vector<4x648xbf16>
    tpu.vector_store %arg9[%c0_46, %c0_47], %59 {strides = array<i32>} : memref<144x648xbf16, #tpu.memory_space<vmem>>, vector<4x648xbf16>,
    %c0_48 = arith.constant 0 : index
    %c110_49 = arith.constant 110 : index
    %61 = vector.load %arg10[%c0_48, %c110_49] : memref<4x904xbf16, #tpu.memory_space<vmem>>, vector<4x648xbf16>
    %c16_50 = arith.constant 16 : index
    %c0_51 = arith.constant 0 : index
    %62 = vector.load %arg9[%c16_50, %c0_51] : memref<144x648xbf16, #tpu.memory_space<vmem>>, vector<4x648xbf16>
    tpu.vector_store %arg9[%c16_50, %c0_51], %61 {strides = array<i32>} : memref<144x648xbf16, #tpu.memory_space<vmem>>, vector<4x648xbf16>,
    %c0_52 = arith.constant 0 : index
    %c111_53 = arith.constant 111 : index
    %63 = vector.load %arg10[%c0_52, %c111_53] : memref<4x904xbf16, #tpu.memory_space<vmem>>, vector<4x648xbf16>
    %c32_54 = arith.constant 32 : index
    %c0_55 = arith.constant 0 : index
    %64 = vector.load %arg9[%c32_54, %c0_55] : memref<144x648xbf16, #tpu.memory_space<vmem>>, vector<4x648xbf16>
    tpu.vector_store %arg9[%c32_54, %c0_55], %63 {strides = array<i32>} : memref<144x648xbf16, #tpu.memory_space<vmem>>, vector<4x648xbf16>,
    %c0_56 = arith.constant 0 : index
    %c127_57 = arith.constant 127 : index
    %65 = vector.load %arg10[%c0_56, %c127_57] : memref<4x904xbf16, #tpu.memory_space<vmem>>, vector<4x648xbf16>
    %c48_58 = arith.constant 48 : index
    %c0_59 = arith.constant 0 : index
    %66 = vector.load %arg9[%c48_58, %c0_59] : memref<144x648xbf16, #tpu.memory_space<vmem>>, vector<4x648xbf16>
    tpu.vector_store %arg9[%c48_58, %c0_59], %65 {strides = array<i32>} : memref<144x648xbf16, #tpu.memory_space<vmem>>, vector<4x648xbf16>,
    %c0_60 = arith.constant 0 : index
    %c128_61 = arith.constant 128 : index
    %67 = vector.load %arg10[%c0_60, %c128_61] : memref<4x904xbf16, #tpu.memory_space<vmem>>, vector<4x648xbf16>
    %c64_62 = arith.constant 64 : index
    %c0_63 = arith.constant 0 : index
    %68 = vector.load %arg9[%c64_62, %c0_63] : memref<144x648xbf16, #tpu.memory_space<vmem>>, vector<4x648xbf16>
    tpu.vector_store %arg9[%c64_62, %c0_63], %67 {strides = array<i32>} : memref<144x648xbf16, #tpu.memory_space<vmem>>, vector<4x648xbf16>,
    %c0_64 = arith.constant 0 : index
    %c129_65 = arith.constant 129 : index
    %69 = vector.load %arg10[%c0_64, %c129_65] : memref<4x904xbf16, #tpu.memory_space<vmem>>, vector<4x648xbf16>
    %c80_66 = arith.constant 80 : index
    %c0_67 = arith.constant 0 : index
    %70 = vector.load %arg9[%c80_66, %c0_67] : memref<144x648xbf16, #tpu.memory_space<vmem>>, vector<4x648xbf16>
    tpu.vector_store %arg9[%c80_66, %c0_67], %69 {strides = array<i32>} : memref<144x648xbf16, #tpu.memory_space<vmem>>, vector<4x648xbf16>,
    %c0_68 = arith.constant 0 : index
    %c145_69 = arith.constant 145 : index
    %71 = vector.load %arg10[%c0_68, %c145_69] : memref<4x904xbf16, #tpu.memory_space<vmem>>, vector<4x648xbf16>
    %c96_70 = arith.constant 96 : index
    %c0_71 = arith.constant 0 : index
    %72 = vector.load %arg9[%c96_70, %c0_71] : memref<144x648xbf16, #tpu.memory_space<vmem>>, vector<4x648xbf16>
    tpu.vector_store %arg9[%c96_70, %c0_71], %71 {strides = array<i32>} : memref<144x648xbf16, #tpu.memory_space<vmem>>, vector<4x648xbf16>,
    %c0_72 = arith.constant 0 : index
    %c146_73 = arith.constant 146 : index
    %73 = vector.load %arg10[%c0_72, %c146_73] : memref<4x904xbf16, #tpu.memory_space<vmem>>, vector<4x648xbf16>
    %c112_74 = arith.constant 112 : index
    %c0_75 = arith.constant 0 : index
    %74 = vector.load %arg9[%c112_74, %c0_75] : memref<144x648xbf16, #tpu.memory_space<vmem>>, vector<4x648xbf16>
    tpu.vector_store %arg9[%c112_74, %c0_75], %73 {strides = array<i32>} : memref<144x648xbf16, #tpu.memory_space<vmem>>, vector<4x648xbf16>,
    %c0_76 = arith.constant 0 : index
    %c147_77 = arith.constant 147 : index
    %75 = vector.load %arg10[%c0_76, %c147_77] : memref<4x904xbf16, #tpu.memory_space<vmem>>, vector<4x648xbf16>
    %c128_78 = arith.constant 128 : index
    %c0_79 = arith.constant 0 : index
    %76 = vector.load %arg9[%c128_78, %c0_79] : memref<144x648xbf16, #tpu.memory_space<vmem>>, vector<4x648xbf16>
    tpu.vector_store %arg9[%c128_78, %c0_79], %75 {strides = array<i32>} : memref<144x648xbf16, #tpu.memory_space<vmem>>, vector<4x648xbf16>,
    %c0_80 = arith.constant 0 : index
    %c0_81 = arith.constant 0 : index
    %77 = vector.load %arg5[%c0_80, %c0_81] : memref<4x144xbf16, #tpu.memory_space<vmem>>, vector<4x144xbf16>
    %c0_82 = arith.constant 0 : index
    %c0_83 = arith.constant 0 : index
    %78 = vector.load %arg9[%c0_82, %c0_83] : memref<144x648xbf16, #tpu.memory_space<vmem>>, vector<144x648xbf16>
    %cst_84 = arith.constant dense<0.000000e+00> : vector<4x648xf32>
    %79 = tpu.matmul %77, %78, %cst_84 {dimension_numbers = #tpu.dot_dimension_numbers<[1], [0], [0], [1], [0, 0, 1, 1], [], []>} : vector<4x144xbf16>, vector<144x648xbf16>, vector<4x648xf32> -> vector<4x648xf32>
    %80 = vector.broadcast %0 : vector<1x648xf32> to vector<4x648xf32>
    %81 = arith.mulf %79, %80 : vector<4x648xf32>
    %cst_85 = arith.constant dense<0.000000e+00> : vector<4xf32>
    %82 = vector.multi_reduction <add>, %81, %cst_85 [1] : vector<4x648xf32> to vector<4xf32>
    %83 = vector.shape_cast %82 : vector<4xf32> to vector<4x1xf32>
    %84 = arith.mulf %79, %81 : vector<4x648xf32>
    %cst_86 = arith.constant dense<0.000000e+00> : vector<4xf32>
    %85 = vector.multi_reduction <add>, %84, %cst_86 [1] : vector<4x648xf32> to vector<4xf32>
    %86 = vector.shape_cast %85 : vector<4xf32> to vector<4x1xf32>
    %cst_87 = arith.constant 0.001953125 : f32
    %87 = vector.broadcast %cst_87 : f32 to vector<4x1xf32>
    %88 = arith.mulf %83, %87 : vector<4x1xf32>
    %cst_88 = arith.constant 0.001953125 : f32
    %89 = vector.broadcast %cst_88 : f32 to vector<4x1xf32>
    %90 = arith.mulf %86, %89 : vector<4x1xf32>
    %91 = arith.mulf %88, %88 : vector<4x1xf32>
    %92 = arith.subf %90, %91 : vector<4x1xf32>
    %93 = vector.broadcast %88 : vector<4x1xf32> to vector<4x648xf32>
    %94 = arith.subf %79, %93 : vector<4x648xf32>
    %cst_89 = arith.constant 9.99999974E-6 : f32
    %95 = vector.broadcast %cst_89 : f32 to vector<4x1xf32>
    %96 = arith.addf %92, %95 : vector<4x1xf32>
    %97 = math.rsqrt %96 : vector<4x1xf32>
    %98 = vector.broadcast %97 : vector<4x1xf32> to vector<4x648xf32>
    %99 = arith.mulf %94, %98 : vector<4x648xf32>
    %c0_90 = arith.constant 0 : index
    %c0_91 = arith.constant 0 : index
    %100 = vector.load %arg6[%c0_90, %c0_91] : memref<4x1xf32, #tpu.memory_space<vmem>>, vector<4x1xf32>
    %101 = vector.broadcast %100 : vector<4x1xf32> to vector<4x648xf32>
    %102 = arith.mulf %99, %101 : vector<4x648xf32>
    %c0_92 = arith.constant 0 : index
    %c0_93 = arith.constant 0 : index
    %103 = vector.load %arg7[%c0_92, %c0_93] : memref<4x1xf32, #tpu.memory_space<vmem>>, vector<4x1xf32>
    %104 = vector.broadcast %103 : vector<4x1xf32> to vector<4x648xf32>
    %105 = arith.addf %102, %104 : vector<4x648xf32>
    %cst_94 = arith.constant 0.000000e+00 : f32
    %106 = vector.broadcast %cst_94 : f32 to vector<4x648xf32>
    %107 = arith.maximumf %105, %106 : vector<4x648xf32>
    %c0_95 = arith.constant 0 : index
    %c0_96 = arith.constant 0 : index
    %108 = vector.load %arg8[%c0_95, %c0_96] : memref<4x648xf32, #tpu.memory_space<vmem>>, vector<4x648xf32>
    tpu.vector_store %arg8[%c0_95, %c0_96], %107 {strides = array<i32>} : memref<4x648xf32, #tpu.memory_space<vmem>>, vector<4x648xf32>,
    return
  }
}

</mosaic_0001>

<llo_original>
// kernel: tpu_custom_call.1
$region0: #{tpu_custom_call.1}
  #allocation0 [shape = 'u32[]', space=smem, size = 0x4, offset = 0x4, fixed_abs, tag = 'smem constant byte address 0x4 - core index']
  #allocation1 [shape = 'u32[144,128]{1,0:T(1,128)}', space=vmem, size = 0x12000, scoped, tag = 'internal scratch']
  #allocation2 [shape = 'bf16[144,648]{1,0:T(16,128)(2,1)}', space=vmem, size = 0x36000, scoped, tag = 'scratch operand']
  #allocation3 [shape = 'bf16[4,904]{1,0:T(4,128)(2,1)}', space=vmem, size = 0x2000, scoped, tag = 'scratch operand']
  %s0 = inlined_call_operand.hbm [shape: bf16[8,904], index: 0, kind: input, shape index: {}]
  %s1 = inlined_call_operand.vmem [shape: f32[1,648], index: 1, kind: input, shape index: {}]
  %s2 = inlined_call_operand.vmem [shape: bf16[4,144], index: 2, kind: input, shape index: {}]
  %s3 = inlined_call_operand.vmem [shape: f32[4,1], index: 3, kind: input, shape index: {}]
  %s4 = inlined_call_operand.vmem [shape: f32[4,1], index: 4, kind: input, shape index: {}]
  %s5 = inlined_call_operand.vmem [shape: bf16[4,144], index: 5, kind: input, shape index: {}]
  %s6 = inlined_call_operand.vmem [shape: f32[4,1], index: 6, kind: input, shape index: {}]
  %s7 = inlined_call_operand.vmem [shape: f32[4,1], index: 7, kind: input, shape index: {}]
  %s8 = inlined_call_operand.hbm [shape: f32[4,648], index: 8, kind: output, shape index: {}]
  %s9 = sld [smem:[#allocation0]]
  $region46: #{tpu_custom_call.1} parent=0
    _
  %s11 = ssub.s32 1, %s9
  %s12 = scalar_select 0, %s11, %s9
  $region1: #{tpu_custom_call.1} parent=0
    #allocation4 [shape = 'u8[16384]{0}', space=vmem, size = 0x4000, scoped, tag = 'input window, operand 0, single buffered']
    #allocation5 [shape = 's32[1]{0}', space=sflag, size = 0x4, scoped, tag = 'scoped memory for tpu_custom_call.1']
    #allocation6 [shape = 's32[1]{0}', space=sflag, size = 0x4, scoped, tag = 'scoped memory for tpu_custom_call.1']
    #allocation7 [shape = 'u8[12288]{0}', space=vmem, size = 0x3000, scoped, tag = 'output window, operand 0, single buffered']
    %13 = vsyncpa [#allocation5], 0
    %14 = vsyncpa [#allocation6], 0
    // Predicated region
    $region2: #{tpu_custom_call.1} parent=1 // pred_check
      _
    $region3: #{tpu_custom_call.1} parent=1 // pred_check_branch
      %16 = sbr.rel (0) target = $region5
    $region4: #{tpu_custom_call.1} parent=1 // pred_region
      %s18 = ssub.s32 512, 512
      %19 = vsyncadd [#allocation5], %s18
      %s21 = sshll.u32 [#allocation4], 4
      %s22 = int_to_ptr.vmem [resolvable:$true] %s21
      %24 = dma.hbm_to_vmem [thread:$0]  %s0, 512, %s22, [#allocation5]
    $region5: #{tpu_custom_call.1} parent=1 // pred_fallthru
      _
    // Predicated region
    $region6: #{tpu_custom_call.1} parent=1 // pred_check
      _
    $region7: #{tpu_custom_call.1} parent=1 // pred_check_branch
      %26 = sbr.rel (0) target = $region9
    $region8: #{tpu_custom_call.1} parent=1 // pred_region
      _
    $region9: #{tpu_custom_call.1} parent=1 // pred_fallthru
      _
    // Predicated region
    $region10: #{tpu_custom_call.1} parent=1 // pred_check
      _
    $region11: #{tpu_custom_call.1} parent=1 // pred_check_branch
      %28 = sbr.rel (0) target = $region13
    $region12: #{tpu_custom_call.1} parent=1 // pred_region
      _
    $region13: #{tpu_custom_call.1} parent=1 // pred_fallthru
      _
    // Predicated region
    $region14: #{tpu_custom_call.1} parent=1 // pred_check
      _
    $region15: #{tpu_custom_call.1} parent=1 // pred_check_branch
      %30 = sbr.rel (0) target = $region17
    $region16: #{tpu_custom_call.1} parent=1 // pred_region
      _
    $region17: #{tpu_custom_call.1} parent=1 // pred_fallthru
      _
    // Predicated region
    $region18: #{tpu_custom_call.1} parent=1 // pred_check
      _
    $region19: #{tpu_custom_call.1} parent=1 // pred_check_branch
      %32 = sbr.rel (0) target = $region21
    $region20: #{tpu_custom_call.1} parent=1 // pred_region
      _
    $region21: #{tpu_custom_call.1} parent=1 // pred_fallthru
      _
    // Predicated region
    $region22: #{tpu_custom_call.1} parent=1 // pred_check
      _
    $region23: #{tpu_custom_call.1} parent=1 // pred_check_branch
      %34 = sbr.rel (0) target = $region25
    $region24: #{tpu_custom_call.1} parent=1 // pred_region
      _
    $region25: #{tpu_custom_call.1} parent=1 // pred_fallthru
      _
    // Predicated region
    $region26: #{tpu_custom_call.1} parent=1 // pred_check
      _
    $region27: #{tpu_custom_call.1} parent=1 // pred_check_branch
      %36 = sbr.rel (0) target = $region29
    $region28: #{tpu_custom_call.1} parent=1 // pred_region
      _
    $region29: #{tpu_custom_call.1} parent=1 // pred_fallthru
      _
    // Predicated region
    $region30: #{tpu_custom_call.1} parent=1 // pred_check
      _
    $region31: #{tpu_custom_call.1} parent=1 // pred_check_branch
      %38 = sbr.rel (0) target = $region33
    $region32: #{tpu_custom_call.1} parent=1 // pred_region
      _
    $region33: #{tpu_custom_call.1} parent=1 // pred_fallthru
      _
    // Predicated region
    $region34: #{tpu_custom_call.1} parent=1 // pred_check
      _
    $region35: #{tpu_custom_call.1} parent=1 // pred_check_branch
      %40 = sbr.rel (0) target = $region37
    $region36: #{tpu_custom_call.1} parent=1 // pred_region
      %41 = dma.done [#allocation5], 512
    $region37: #{tpu_custom_call.1} parent=1 // pred_fallthru
      _
    %v43 = vld [vmem:[%s1] sm:$0x3f]
    %44 = vst [vmem:[#allocation2] sm:$0xff] 0
    %45 = vst [vmem:[#allocation2 + $0x8] sm:$0xff] 0
    %46 = vst [vmem:[#allocation2 + $0x10] sm:$0xff] 0
    %47 = vst [vmem:[#allocation2 + $0x18] sm:$0xff] 0
    %48 = vst [vmem:[#allocation2 + $0x20] sm:$0xff] 0
    %vm49 = vcmask 64512
    %50 = vst.msk [vmem:[#allocation2 + $0x28] sm:$0xff] %vm49, 0
    %51 = vst [vmem:[#allocation2 + $0x30] sm:$0xff] 0
    %52 = vst [vmem:[#allocation2 + $0x38] sm:$0xff] 0
    %53 = vst [vmem:[#allocation2 + $0x40] sm:$0xff] 0
    %54 = vst [vmem:[#allocation2 + $0x48] sm:$0xff] 0
    %55 = vst [vmem:[#allocation2 + $0x50] sm:$0xff] 0
    %56 = vst.msk [vmem:[#allocation2 + $0x58] sm:$0xff] %vm49, 0
    %57 = vst [vmem:[#allocation2 + $0x60] sm:$0xff] 0
    %58 = vst [vmem:[#allocation2 + $0x68] sm:$0xff] 0
    %59 = vst [vmem:[#allocation2 + $0x70] sm:$0xff] 0
    %60 = vst [vmem:[#allocation2 + $0x78] sm:$0xff] 0
    %61 = vst [vmem:[#allocation2 + $0x80] sm:$0xff] 0
    %62 = vst.msk [vmem:[#allocation2 + $0x88] sm:$0xff] %vm49, 0
    %63 = vst [vmem:[#allocation2 + $0x90] sm:$0xff] 0
    %64 = vst [vmem:[#allocation2 + $0x98] sm:$0xff] 0
    %65 = vst [vmem:[#allocation2 + $0xa0] sm:$0xff] 0
    %66 = vst [vmem:[#allocation2 + $0xa8] sm:$0xff] 0
    %67 = vst [vmem:[#allocation2 + $0xb0] sm:$0xff] 0
    %68 = vst.msk [vmem:[#allocation2 + $0xb8] sm:$0xff] %vm49, 0
    %69 = vst [vmem:[#allocation2 + $0xc0] sm:$0xff] 0
    %70 = vst [vmem:[#allocation2 + $0xc8] sm:$0xff] 0
    %71 = vst [vmem:[#allocation2 + $0xd0] sm:$0xff] 0
    %72 = vst [vmem:[#allocation2 + $0xd8] sm:$0xff] 0
    %73 = vst [vmem:[#allocation2 + $0xe0] sm:$0xff] 0
    %74 = vst.msk [vmem:[#allocation2 + $0xe8] sm:$0xff] %vm49, 0
    %75 = vst [vmem:[#allocation2 + $0xf0] sm:$0xff] 0
    %76 = vst [vmem:[#allocation2 + $0xf8] sm:$0xff] 0
    %77 = vst [vmem:[#allocation2 + $0x100] sm:$0xff] 0
    %78 = vst [vmem:[#allocation2 + $0x108] sm:$0xff] 0
    %79 = vst [vmem:[#allocation2 + $0x110] sm:$0xff] 0
    %80 = vst.msk [vmem:[#allocation2 + $0x118] sm:$0xff] %vm49, 0
    %81 = vst [vmem:[#allocation2 + $0x120] sm:$0xff] 0
    %82 = vst [vmem:[#allocation2 + $0x128] sm:$0xff] 0
    %83 = vst [vmem:[#allocation2 + $0x130] sm:$0xff] 0
    %84 = vst [vmem:[#allocation2 + $0x138] sm:$0xff] 0
    %85 = vst [vmem:[#allocation2 + $0x140] sm:$0xff] 0
    %86 = vst.msk [vmem:[#allocation2 + $0x148] sm:$0xff] %vm49, 0
    %87 = vst [vmem:[#allocation2 + $0x150] sm:$0xff] 0
    %88 = vst [vmem:[#allocation2 + $0x158] sm:$0xff] 0
    %89 = vst [vmem:[#allocation2 + $0x160] sm:$0xff] 0
    %90 = vst [vmem:[#allocation2 + $0x168] sm:$0xff] 0
    %91 = vst [vmem:[#allocation2 + $0x170] sm:$0xff] 0
    %92 = vst.msk [vmem:[#allocation2 + $0x178] sm:$0xff] %vm49, 0
    %93 = vst [vmem:[#allocation2 + $0x180] sm:$0xff] 0
    %94 = vst [vmem:[#allocation2 + $0x188] sm:$0xff] 0
    %95 = vst [vmem:[#allocation2 + $0x190] sm:$0xff] 0
    %96 = vst [vmem:[#allocation2 + $0x198] sm:$0xff] 0
    %97 = vst [vmem:[#allocation2 + $0x1a0] sm:$0xff] 0
    %98 = vst.msk [vmem:[#allocation2 + $0x1a8] sm:$0xff] %vm49, 0
    %v99 = vld [vmem:[#allocation4] sm:$0xff]
    %v100 = vld [vmem:[#allocation4 + $0x8] sm:$0xff]
    %v101 = vld [vmem:[#allocation4 + $0x10] sm:$0xff]
    %v105 = vunpack.c.l.b16 %v99
    %v106 = vunpack.c.h.b16 %v99
    %v107 = vunpack.c.l.b16 %v100
    %v108 = vunpack.c.h.b16 %v100
    %v109 = vunpack.c.l.b16 %v101
    %v110 = vunpack.c.h.b16 %v101
    %v111 = vpack.c.b16 %v105, %v105
    %v112 = vpack.c.b16 %v106, %v106
    %v113 = vpack.c.b16 %v107, %v107
    %v114 = vpack.c.b16 %v108, %v108
    %v115 = vpack.c.b16 %v109, %v109
    %v116 = vpack.c.b16 %v110, %v110
    %117 = vrot.lane.b32.xlu0 %v111, 19
    %v118 = vpop.permute.xlu0 %117
    %119 = vrot.lane.b32.xlu0 %v112, 19
    %v120 = vpop.permute.xlu0 %119
    %121 = vrot.lane.b32.xlu0 %v113, 19
    %v122 = vpop.permute.xlu0 %121
    %123 = vrot.lane.b32.xlu0 %v114, 19
    %v124 = vpop.permute.xlu0 %123
    %125 = vrot.lane.b32.xlu0 %v115, 19
    %v126 = vpop.permute.xlu0 %125
    %127 = vrot.lane.b32.xlu0 %v116, 19
    %v128 = vpop.permute.xlu0 %127
    %vm129 = vcmask 154624
    %v130 = vsel %vm129, %v118, %v120
    %v131 = vsel %vm129, %v120, %v122
    %v132 = vsel %vm129, %v122, %v124
    %v133 = vsel %vm129, %v124, %v126
    %v134 = vsel %vm129, %v126, %v128
    %141 = vst [vmem:[#allocation2] sm:$0xf] %v130
    %142 = vst [vmem:[#allocation2 + $0x8] sm:$0xf] %v131
    %143 = vst [vmem:[#allocation2 + $0x10] sm:$0xf] %v132
    %144 = vst [vmem:[#allocation2 + $0x18] sm:$0xf] %v133
    %145 = vst [vmem:[#allocation2 + $0x20] sm:$0xf] %v134
    %vm146 = vcmask 60416
    %147 = vst.msk [vmem:[#allocation2 + $0x28] sm:$0xf] %vm146, %v128
    %v148 = vld [vmem:[#allocation4] sm:$0xff]
    %v149 = vld [vmem:[#allocation4 + $0x8] sm:$0xff]
    %v150 = vld [vmem:[#allocation4 + $0x10] sm:$0xff]
    %v154 = vunpack.c.l.b16 %v148
    %v155 = vunpack.c.h.b16 %v148
    %v156 = vunpack.c.l.b16 %v149
    %v157 = vunpack.c.h.b16 %v149
    %v158 = vunpack.c.l.b16 %v150
    %v159 = vunpack.c.h.b16 %v150
    %v160 = vpack.c.b16 %v154, %v154
    %v161 = vpack.c.b16 %v155, %v155
    %v162 = vpack.c.b16 %v156, %v156
    %v163 = vpack.c.b16 %v157, %v157
    %v164 = vpack.c.b16 %v158, %v158
    %v165 = vpack.c.b16 %v159, %v159
    %166 = vrot.lane.b32.xlu0 %v160, 18
    %v167 = vpop.permute.xlu0 %166
    %168 = vrot.lane.b32.xlu0 %v161, 18
    %v169 = vpop.permute.xlu0 %168
    %170 = vrot.lane.b32.xlu0 %v162, 18
    %v171 = vpop.permute.xlu0 %170
    %172 = vrot.lane.b32.xlu0 %v163, 18
    %v173 = vpop.permute.xlu0 %172
    %174 = vrot.lane.b32.xlu0 %v164, 18
    %v175 = vpop.permute.xlu0 %174
    %176 = vrot.lane.b32.xlu0 %v165, 18
    %v177 = vpop.permute.xlu0 %176
    %vm178 = vcmask 146432
    %v179 = vsel %vm178, %v167, %v169
    %v180 = vsel %vm178, %v169, %v171
    %v181 = vsel %vm178, %v171, %v173
    %v182 = vsel %vm178, %v173, %v175
    %v183 = vsel %vm178, %v175, %v177
    %190 = vst [vmem:[#allocation2 + $0x30] sm:$0xf] %v179
    %191 = vst [vmem:[#allocation2 + $0x38] sm:$0xf] %v180
    %192 = vst [vmem:[#allocation2 + $0x40] sm:$0xf] %v181
    %193 = vst [vmem:[#allocation2 + $0x48] sm:$0xf] %v182
    %194 = vst [vmem:[#allocation2 + $0x50] sm:$0xf] %v183
    %195 = vst.msk [vmem:[#allocation2 + $0x58] sm:$0xf] %vm146, %v177
    %v196 = vld [vmem:[#allocation4] sm:$0xff]
    %v197 = vld [vmem:[#allocation4 + $0x8] sm:$0xff]
    %v198 = vld [vmem:[#allocation4 + $0x10] sm:$0xff]
    %v202 = vunpack.c.l.b16 %v196
    %v203 = vunpack.c.h.b16 %v196
    %v204 = vunpack.c.l.b16 %v197
    %v205 = vunpack.c.h.b16 %v197
    %v206 = vunpack.c.l.b16 %v198
    %v207 = vunpack.c.h.b16 %v198
    %v208 = vpack.c.b16 %v202, %v202
    %v209 = vpack.c.b16 %v203, %v203
    %v210 = vpack.c.b16 %v204, %v204
    %v211 = vpack.c.b16 %v205, %v205
    %v212 = vpack.c.b16 %v206, %v206
    %v213 = vpack.c.b16 %v207, %v207
    %214 = vrot.lane.b32.xlu0 %v208, 17
    %v215 = vpop.permute.xlu0 %214
    %216 = vrot.lane.b32.xlu0 %v209, 17
    %v217 = vpop.permute.xlu0 %216
    %218 = vrot.lane.b32.xlu0 %v210, 17
    %v219 = vpop.permute.xlu0 %218
    %220 = vrot.lane.b32.xlu0 %v211, 17
    %v221 = vpop.permute.xlu0 %220
    %222 = vrot.lane.b32.xlu0 %v212, 17
    %v223 = vpop.permute.xlu0 %222
    %224 = vrot.lane.b32.xlu0 %v213, 17
    %v225 = vpop.permute.xlu0 %224
    %vm226 = vcmask 138240
    %v227 = vsel %vm226, %v215, %v217
    %v228 = vsel %vm226, %v217, %v219
    %v229 = vsel %vm226, %v219, %v221
    %v230 = vsel %vm226, %v221, %v223
    %v231 = vsel %vm226, %v223, %v225
    %238 = vst [vmem:[#allocation2 + $0x60] sm:$0xf] %v227
    %239 = vst [vmem:[#allocation2 + $0x68] sm:$0xf] %v228
    %240 = vst [vmem:[#allocation2 + $0x70] sm:$0xf] %v229
    %241 = vst [vmem:[#allocation2 + $0x78] sm:$0xf] %v230
    %242 = vst [vmem:[#allocation2 + $0x80] sm:$0xf] %v231
    %243 = vst.msk [vmem:[#allocation2 + $0x88] sm:$0xf] %vm146, %v225
    %v244 = vld [vmem:[#allocation4] sm:$0xff]
    %v245 = vld [vmem:[#allocation4 + $0x8] sm:$0xff]
    %v246 = vld [vmem:[#allocation4 + $0x10] sm:$0xff]
    %v247 = vld [vmem:[#allocation4 + $0x18] sm:$0xf]
    %v252 = vunpack.c.l.b16 %v244
    %v253 = vunpack.c.h.b16 %v244
    %v254 = vunpack.c.l.b16 %v245
    %v255 = vunpack.c.h.b16 %v245
    %v256 = vunpack.c.l.b16 %v246
    %v257 = vunpack.c.h.b16 %v246
    %v258 = vunpack.c.l.b16 %v247
    %v259 = vpack.c.b16 %v252, %v252
    %v260 = vpack.c.b16 %v253, %v253
    %v261 = vpack.c.b16 %v254, %v254
    %v262 = vpack.c.b16 %v255, %v255
    %v263 = vpack.c.b16 %v256, %v256
    %v264 = vpack.c.b16 %v257, %v257
    %v265 = vpack.c.b16 %v258, %v258
    %266 = vrot.lane.b32.xlu0 %v259, 1
    %v267 = vpop.permute.xlu0 %266
    %268 = vrot.lane.b32.xlu0 %v260, 1
    %v269 = vpop.permute.xlu0 %268
    %270 = vrot.lane.b32.xlu0 %v261, 1
    %v271 = vpop.permute.xlu0 %270
    %272 = vrot.lane.b32.xlu0 %v262, 1
    %v273 = vpop.permute.xlu0 %272
    %274 = vrot.lane.b32.xlu0 %v263, 1
    %v275 = vpop.permute.xlu0 %274
    %276 = vrot.lane.b32.xlu0 %v264, 1
    %v277 = vpop.permute.xlu0 %276
    %278 = vrot.lane.b32.xlu0 %v265, 1
    %v279 = vpop.permute.xlu0 %278
    %vm280 = vcmask 7168
    %v281 = vsel %vm280, %v267, %v269
    %v282 = vsel %vm280, %v269, %v271
    %v283 = vsel %vm280, %v271, %v273
    %v284 = vsel %vm280, %v273, %v275
    %v285 = vsel %vm280, %v275, %v277
    %v286 = vsel %vm280, %v277, %v279
    %293 = vst [vmem:[#allocation2 + $0x90] sm:$0xf] %v281
    %294 = vst [vmem:[#allocation2 + $0x98] sm:$0xf] %v282
    %295 = vst [vmem:[#allocation2 + $0xa0] sm:$0xf] %v283
    %296 = vst [vmem:[#allocation2 + $0xa8] sm:$0xf] %v284
    %297 = vst [vmem:[#allocation2 + $0xb0] sm:$0xf] %v285
    %298 = vst.msk [vmem:[#allocation2 + $0xb8] sm:$0xf] %vm146, %v286
    %v299 = vld [vmem:[#allocation4 + $0x4] sm:$0xff]
    %v300 = vld [vmem:[#allocation4 + $0xc] sm:$0xff]
    %v301 = vld [vmem:[#allocation4 + $0x14] sm:$0xff]
    %v305 = vunpack.c.l.b16 %v299
    %v306 = vunpack.c.h.b16 %v299
    %v307 = vunpack.c.l.b16 %v300
    %v308 = vunpack.c.h.b16 %v300
    %v309 = vunpack.c.l.b16 %v301
    %v310 = vunpack.c.h.b16 %v301
    %v311 = vpack.c.b16 %v305, %v305
    %v312 = vpack.c.b16 %v306, %v306
    %v313 = vpack.c.b16 %v307, %v307
    %v314 = vpack.c.b16 %v308, %v308
    %v315 = vpack.c.b16 %v309, %v309
    %v316 = vpack.c.b16 %v310, %v310
    %323 = vst [vmem:[#allocation2 + $0xc0] sm:$0xf] %v311
    %324 = vst [vmem:[#allocation2 + $0xc8] sm:$0xf] %v312
    %325 = vst [vmem:[#allocation2 + $0xd0] sm:$0xf] %v313
    %326 = vst [vmem:[#allocation2 + $0xd8] sm:$0xf] %v314
    %327 = vst [vmem:[#allocation2 + $0xe0] sm:$0xf] %v315
    %328 = vst.msk [vmem:[#allocation2 + $0xe8] sm:$0xf] %vm146, %v316
    %v329 = vld [vmem:[#allocation4 + $0x4] sm:$0xff]
    %v330 = vld [vmem:[#allocation4 + $0xc] sm:$0xff]
    %v331 = vld [vmem:[#allocation4 + $0x14] sm:$0xff]
    %v335 = vunpack.c.l.b16 %v329
    %v336 = vunpack.c.h.b16 %v329
    %v337 = vunpack.c.l.b16 %v330
    %v338 = vunpack.c.h.b16 %v330
    %v339 = vunpack.c.l.b16 %v331
    %v340 = vunpack.c.h.b16 %v331
    %v341 = vpack.c.b16 %v335, %v335
    %v342 = vpack.c.b16 %v336, %v336
    %v343 = vpack.c.b16 %v337, %v337
    %v344 = vpack.c.b16 %v338, %v338
    %v345 = vpack.c.b16 %v339, %v339
    %v346 = vpack.c.b16 %v340, %v340
    %347 = vrot.lane.b32.xlu0 %v341, 127
    %v348 = vpop.permute.xlu0 %347
    %349 = vrot.lane.b32.xlu0 %v342, 127
    %v350 = vpop.permute.xlu0 %349
    %351 = vrot.lane.b32.xlu0 %v343, 127
    %v352 = vpop.permute.xlu0 %351
    %353 = vrot.lane.b32.xlu0 %v344, 127
    %v354 = vpop.permute.xlu0 %353
    %355 = vrot.lane.b32.xlu0 %v345, 127
    %v356 = vpop.permute.xlu0 %355
    %357 = vrot.lane.b32.xlu0 %v346, 127
    %v358 = vpop.permute.xlu0 %357
    %vm359 = vcmask 1039360
    %v360 = vsel %vm359, %v348, %v350
    %v361 = vsel %vm359, %v350, %v352
    %v362 = vsel %vm359, %v352, %v354
    %v363 = vsel %vm359, %v354, %v356
    %v364 = vsel %vm359, %v356, %v358
    %371 = vst [vmem:[#allocation2 + $0xf0] sm:$0xf] %v360
    %372 = vst [vmem:[#allocation2 + $0xf8] sm:$0xf] %v361
    %373 = vst [vmem:[#allocation2 + $0x100] sm:$0xf] %v362
    %374 = vst [vmem:[#allocation2 + $0x108] sm:$0xf] %v363
    %375 = vst [vmem:[#allocation2 + $0x110] sm:$0xf] %v364
    %376 = vst.msk [vmem:[#allocation2 + $0x118] sm:$0xf] %vm146, %v358
    %v377 = vld [vmem:[#allocation4 + $0x4] sm:$0xff]
    %v378 = vld [vmem:[#allocation4 + $0xc] sm:$0xff]
    %v379 = vld [vmem:[#allocation4 + $0x14] sm:$0xff]
    %v383 = vunpack.c.l.b16 %v377
    %v384 = vunpack.c.h.b16 %v377
    %v385 = vunpack.c.l.b16 %v378
    %v386 = vunpack.c.h.b16 %v378
    %v387 = vunpack.c.l.b16 %v379
    %v388 = vunpack.c.h.b16 %v379
    %v389 = vpack.c.b16 %v383, %v383
    %v390 = vpack.c.b16 %v384, %v384
    %v391 = vpack.c.b16 %v385, %v385
    %v392 = vpack.c.b16 %v386, %v386
    %v393 = vpack.c.b16 %v387, %v387
    %v394 = vpack.c.b16 %v388, %v388
    %395 = vrot.lane.b32.xlu0 %v389, 111
    %v396 = vpop.permute.xlu0 %395
    %397 = vrot.lane.b32.xlu0 %v390, 111
    %v398 = vpop.permute.xlu0 %397
    %399 = vrot.lane.b32.xlu0 %v391, 111
    %v400 = vpop.permute.xlu0 %399
    %401 = vrot.lane.b32.xlu0 %v392, 111
    %v402 = vpop.permute.xlu0 %401
    %403 = vrot.lane.b32.xlu0 %v393, 111
    %v404 = vpop.permute.xlu0 %403
    %405 = vrot.lane.b32.xlu0 %v394, 111
    %v406 = vpop.permute.xlu0 %405
    %vm407 = vcmask 908288
    %v408 = vsel %vm407, %v396, %v398
    %v409 = vsel %vm407, %v398, %v400
    %v410 = vsel %vm407, %v400, %v402
    %v411 = vsel %vm407, %v402, %v404
    %v412 = vsel %vm407, %v404, %v406
    %419 = vst [vmem:[#allocation2 + $0x120] sm:$0xf] %v408
    %420 = vst [vmem:[#allocation2 + $0x128] sm:$0xf] %v409
    %421 = vst [vmem:[#allocation2 + $0x130] sm:$0xf] %v410
    %422 = vst [vmem:[#allocation2 + $0x138] sm:$0xf] %v411
    %423 = vst [vmem:[#allocation2 + $0x140] sm:$0xf] %v412
    %424 = vst.msk [vmem:[#allocation2 + $0x148] sm:$0xf] %vm146, %v406
    %v425 = vld [vmem:[#allocation4 + $0x4] sm:$0xff]
    %v426 = vld [vmem:[#allocation4 + $0xc] sm:$0xff]
    %v427 = vld [vmem:[#allocation4 + $0x14] sm:$0xff]
    %v431 = vunpack.c.l.b16 %v425
    %v432 = vunpack.c.h.b16 %v425
    %v433 = vunpack.c.l.b16 %v426
    %v434 = vunpack.c.h.b16 %v426
    %v435 = vunpack.c.l.b16 %v427
    %v436 = vunpack.c.h.b16 %v427
    %v437 = vpack.c.b16 %v431, %v431
    %v438 = vpack.c.b16 %v432, %v432
    %v439 = vpack.c.b16 %v433, %v433
    %v440 = vpack.c.b16 %v434, %v434
    %v441 = vpack.c.b16 %v435, %v435
    %v442 = vpack.c.b16 %v436, %v436
    %443 = vrot.lane.b32.xlu0 %v437, 110
    %v444 = vpop.permute.xlu0 %443
    %445 = vrot.lane.b32.xlu0 %v438, 110
    %v446 = vpop.permute.xlu0 %445
    %447 = vrot.lane.b32.xlu0 %v439, 110
    %v448 = vpop.permute.xlu0 %447
    %449 = vrot.lane.b32.xlu0 %v440, 110
    %v450 = vpop.permute.xlu0 %449
    %451 = vrot.lane.b32.xlu0 %v441, 110
    %v452 = vpop.permute.xlu0 %451
    %453 = vrot.lane.b32.xlu0 %v442, 110
    %v454 = vpop.permute.xlu0 %453
    %vm455 = vcmask 900096
    %v456 = vsel %vm455, %v444, %v446
    %v457 = vsel %vm455, %v446, %v448
    %v458 = vsel %vm455, %v448, %v450
    %v459 = vsel %vm455, %v450, %v452
    %v460 = vsel %vm455, %v452, %v454
    %467 = vst [vmem:[#allocation2 + $0x150] sm:$0xf] %v456
    %468 = vst [vmem:[#allocation2 + $0x158] sm:$0xf] %v457
    %469 = vst [vmem:[#allocation2 + $0x160] sm:$0xf] %v458
    %470 = vst [vmem:[#allocation2 + $0x168] sm:$0xf] %v459
    %471 = vst [vmem:[#allocation2 + $0x170] sm:$0xf] %v460
    %472 = vst.msk [vmem:[#allocation2 + $0x178] sm:$0xf] %vm146, %v454
    %v473 = vld [vmem:[#allocation4 + $0x4] sm:$0xff]
    %v474 = vld [vmem:[#allocation4 + $0xc] sm:$0xff]
    %v475 = vld [vmem:[#allocation4 + $0x14] sm:$0xff]
    %v479 = vunpack.c.l.b16 %v473
    %v480 = vunpack.c.h.b16 %v473
    %v481 = vunpack.c.l.b16 %v474
    %v482 = vunpack.c.h.b16 %v474
    %v483 = vunpack.c.l.b16 %v475
    %v484 = vunpack.c.h.b16 %v475
    %v485 = vpack.c.b16 %v479, %v479
    %v486 = vpack.c.b16 %v480, %v480
    %v487 = vpack.c.b16 %v481, %v481
    %v488 = vpack.c.b16 %v482, %v482
    %v489 = vpack.c.b16 %v483, %v483
    %v490 = vpack.c.b16 %v484, %v484
    %491 = vrot.lane.b32.xlu0 %v485, 109
    %v492 = vpop.permute.xlu0 %491
    %493 = vrot.lane.b32.xlu0 %v486, 109
    %v494 = vpop.permute.xlu0 %493
    %495 = vrot.lane.b32.xlu0 %v487, 109
    %v496 = vpop.permute.xlu0 %495
    %497 = vrot.lane.b32.xlu0 %v488, 109
    %v498 = vpop.permute.xlu0 %497
    %499 = vrot.lane.b32.xlu0 %v489, 109
    %v500 = vpop.permute.xlu0 %499
    %501 = vrot.lane.b32.xlu0 %v490, 109
    %v502 = vpop.permute.xlu0 %501
    %vm503 = vcmask 891904
    %v504 = vsel %vm503, %v492, %v494
    %v505 = vsel %vm503, %v494, %v496
    %v506 = vsel %vm503, %v496, %v498
    %v507 = vsel %vm503, %v498, %v500
    %v508 = vsel %vm503, %v500, %v502
    %515 = vst [vmem:[#allocation2 + $0x180] sm:$0xf] %v504
    %516 = vst [vmem:[#allocation2 + $0x188] sm:$0xf] %v505
    %517 = vst [vmem:[#allocation2 + $0x190] sm:$0xf] %v506
    %518 = vst [vmem:[#allocation2 + $0x198] sm:$0xf] %v507
    %519 = vst [vmem:[#allocation2 + $0x1a0] sm:$0xf] %v508
    %520 = vst.msk [vmem:[#allocation2 + $0x1a8] sm:$0xf] %vm146, %v502
    %v521 = vld [vmem:[%s2] sm:$0xf]
    %v522 = vld [vmem:[#allocation2] sm:$0xff]
    %v523 = vld [vmem:[#allocation2 + $0x8] sm:$0xff]
    %v524 = vld [vmem:[#allocation2 + $0x10] sm:$0xff]
    %v525 = vld [vmem:[#allocation2 + $0x18] sm:$0xff]
    %v526 = vld [vmem:[#allocation2 + $0x20] sm:$0xff]
    %v527 = vld [vmem:[#allocation2 + $0x28] sm:$0xff]
    %v528 = vld [vmem:[#allocation2 + $0x30] sm:$0xff]
    %v529 = vld [vmem:[#allocation2 + $0x38] sm:$0xff]
    %v530 = vld [vmem:[#allocation2 + $0x40] sm:$0xff]
    %v531 = vld [vmem:[#allocation2 + $0x48] sm:$0xff]
    %v532 = vld [vmem:[#allocation2 + $0x50] sm:$0xff]
    %v533 = vld [vmem:[#allocation2 + $0x58] sm:$0xff]
    %v534 = vld [vmem:[#allocation2 + $0x60] sm:$0xff]
    %v535 = vld [vmem:[#allocation2 + $0x68] sm:$0xff]
    %v536 = vld [vmem:[#allocation2 + $0x70] sm:$0xff]
    %v537 = vld [vmem:[#allocation2 + $0x78] sm:$0xff]
    %v538 = vld [vmem:[#allocation2 + $0x80] sm:$0xff]
    %v539 = vld [vmem:[#allocation2 + $0x88] sm:$0xff]
    %v540 = vld [vmem:[#allocation2 + $0x90] sm:$0xff]
    %v541 = vld [vmem:[#allocation2 + $0x98] sm:$0xff]
    %v542 = vld [vmem:[#allocation2 + $0xa0] sm:$0xff]
    %v543 = vld [vmem:[#allocation2 + $0xa8] sm:$0xff]
    %v544 = vld [vmem:[#allocation2 + $0xb0] sm:$0xff]
    %v545 = vld [vmem:[#allocation2 + $0xb8] sm:$0xff]
    %v546 = vld [vmem:[#allocation2 + $0xc0] sm:$0xff]
    %v547 = vld [vmem:[#allocation2 + $0xc8] sm:$0xff]
    %v548 = vld [vmem:[#allocation2 + $0xd0] sm:$0xff]
    %v549 = vld [vmem:[#allocation2 + $0xd8] sm:$0xff]
    %v550 = vld [vmem:[#allocation2 + $0xe0] sm:$0xff]
    %v551 = vld [vmem:[#allocation2 + $0xe8] sm:$0xff]
    %v552 = vld [vmem:[#allocation2 + $0xf0] sm:$0xff]
    %v553 = vld [vmem:[#allocation2 + $0xf8] sm:$0xff]
    %v554 = vld [vmem:[#allocation2 + $0x100] sm:$0xff]
    %v555 = vld [vmem:[#allocation2 + $0x108] sm:$0xff]
    %v556 = vld [vmem:[#allocation2 + $0x110] sm:$0xff]
    %v557 = vld [vmem:[#allocation2 + $0x118] sm:$0xff]
    %v558 = vld [vmem:[#allocation2 + $0x120] sm:$0xff]
    %v559 = vld [vmem:[#allocation2 + $0x128] sm:$0xff]
    %v560 = vld [vmem:[#allocation2 + $0x130] sm:$0xff]
    %v561 = vld [vmem:[#allocation2 + $0x138] sm:$0xff]
    %v562 = vld [vmem:[#allocation2 + $0x140] sm:$0xff]
    %v563 = vld [vmem:[#allocation2 + $0x148] sm:$0xff]
    %v564 = vld [vmem:[#allocation2 + $0x150] sm:$0xff]
    %v565 = vld [vmem:[#allocation2 + $0x158] sm:$0xff]
    %v566 = vld [vmem:[#allocation2 + $0x160] sm:$0xff]
    %v567 = vld [vmem:[#allocation2 + $0x168] sm:$0xff]
    %v568 = vld [vmem:[#allocation2 + $0x170] sm:$0xff]
    %v569 = vld [vmem:[#allocation2 + $0x178] sm:$0xff]
    %v570 = vld [vmem:[#allocation2 + $0x180] sm:$0xff]
    %v571 = vld [vmem:[#allocation2 + $0x188] sm:$0xff]
    %v572 = vld [vmem:[#allocation2 + $0x190] sm:$0xff]
    %v573 = vld [vmem:[#allocation2 + $0x198] sm:$0xff]
    %v574 = vld [vmem:[#allocation2 + $0x1a0] sm:$0xff]
    %v575 = vld [vmem:[#allocation2 + $0x1a8] sm:$0xff]
    %v578 = vunpack.c.l.s4 1983009808
    %v579 = vunpack.c.0.s8 %v578
    %v580 = vlaneseq
    %v581 = vshrl.u32 %v580, 7
    %v582 = vsub.s32 %v579, %v581
    %v583 = vrot.slane %v521, %v582
    %v584 = vcombine.high %v583, %v583
    %vm586 = vcmask 130048
    %v588 = vsel %vm586, %v584, 0
    %590 = vmatprep.subr.bf16.mxu0 %v523
    %591 = vmatpush1.bf16.msra.mxu0 %v522
    %592 = vmatprep.subr.bf16.mxu0 %v529
    %593 = vmatpush1.bf16.msra.mxu0 %v528
    %594 = vmatprep.subr.bf16.mxu0 %v535
    %595 = vmatpush1.bf16.msra.mxu0 %v534
    %596 = vmatprep.subr.bf16.mxu0 %v541
    %597 = vmatpush1.bf16.msra.mxu0 %v540
    %598 = vmatprep.subr.bf16.mxu0 %v547
    %599 = vmatpush1.bf16.msra.mxu0 %v546
    %600 = vmatprep.subr.bf16.mxu0 %v553
    %601 = vmatpush1.bf16.msra.mxu0 %v552
    %602 = vmatprep.subr.bf16.mxu0 %v559
    %603 = vmatpush1.bf16.msra.mxu0 %v558
    %604 = vmatprep.subr.bf16.mxu0 %v565
    %605 = vmatpush1.bf16.msra.mxu0 %v564
    %606 = vmatprep.subr.bf16.mxu0 %v571
    %607 = vmatpush1.bf16.msra.mxu0 %v570
    %608 = vmatprep.subr.bf16.mxu0 0
    %609 = vmatpush1.bf16.msra.mxu0 0
    %610 = vmatprep.subr.bf16.mxu0 0
    %611 = vmatpush1.bf16.msra.mxu0 0
    %612 = vmatprep.subr.bf16.mxu0 0
    %613 = vmatpush1.bf16.msra.mxu0 0
    %614 = vmatprep.subr.bf16.mxu0 0
    %615 = vmatpush1.bf16.msra.mxu0 0
    %616 = vmatprep.subr.bf16.mxu0 0
    %617 = vmatpush1.bf16.msra.mxu0 0
    %618 = vmatprep.subr.bf16.mxu0 0
    %619 = vmatpush1.bf16.msra.mxu0 0
    %620 = vmatprep.subr.bf16.mxu0 0
    %621 = vmatpush1.bf16.msra.mxu0 0
    %622 = vmatprep.mubr.bf16.mxu0 %v588
    %623 = vmatmul.mubr.bf16.gmra.mrb[0].mxu0 %v583
    %v624 = vpop.f32.mrb[0].mxu0
    %v625 = vadd.f32 0.0, %v624
    %v626 = vpop.f32.mrb[0].mxu0
    %v627 = vadd.f32 0.0, %v626
    %v628 = vpop.f32.mrb[0].mxu0
    %v629 = vpop.f32.mrb[0].mxu0
    %630 = vdwg.mxu0
    %631 = vmatprep.subr.bf16.mxu0 %v525
    %632 = vmatpush1.bf16.msra.mxu0 %v524
    %633 = vmatprep.subr.bf16.mxu0 %v531
    %634 = vmatpush1.bf16.msra.mxu0 %v530
    %635 = vmatprep.subr.bf16.mxu0 %v537
    %636 = vmatpush1.bf16.msra.mxu0 %v536
    %637 = vmatprep.subr.bf16.mxu0 %v543
    %638 = vmatpush1.bf16.msra.mxu0 %v542
    %639 = vmatprep.subr.bf16.mxu0 %v549
    %640 = vmatpush1.bf16.msra.mxu0 %v548
    %641 = vmatprep.subr.bf16.mxu0 %v555
    %642 = vmatpush1.bf16.msra.mxu0 %v554
    %643 = vmatprep.subr.bf16.mxu0 %v561
    %644 = vmatpush1.bf16.msra.mxu0 %v560
    %645 = vmatprep.subr.bf16.mxu0 %v567
    %646 = vmatpush1.bf16.msra.mxu0 %v566
    %647 = vmatprep.subr.bf16.mxu0 %v573
    %648 = vmatpush1.bf16.msra.mxu0 %v572
    %649 = vmatprep.subr.bf16.mxu0 0
    %650 = vmatpush1.bf16.msra.mxu0 0
    %651 = vmatprep.subr.bf16.mxu0 0
    %652 = vmatpush1.bf16.msra.mxu0 0
    %653 = vmatprep.subr.bf16.mxu0 0
    %654 = vmatpush1.bf16.msra.mxu0 0
    %655 = vmatprep.subr.bf16.mxu0 0
    %656 = vmatpush1.bf16.msra.mxu0 0
    %657 = vmatprep.subr.bf16.mxu0 0
    %658 = vmatpush1.bf16.msra.mxu0 0
    %659 = vmatprep.subr.bf16.mxu0 0
    %660 = vmatpush1.bf16.msra.mxu0 0
    %661 = vmatprep.subr.bf16.mxu0 0
    %662 = vmatpush1.bf16.msra.mxu0 0
    %663 = vmatprep.mubr.bf16.mxu0 %v588
    %664 = vmatmul.mubr.bf16.gmra.mrb[0].mxu0 %v583
    %v665 = vpop.f32.mrb[0].mxu0
    %v666 = vadd.f32 0.0, %v665
    %v667 = vpop.f32.mrb[0].mxu0
    %v668 = vadd.f32 0.0, %v667
    %v669 = vpop.f32.mrb[0].mxu0
    %v670 = vpop.f32.mrb[0].mxu0
    %671 = vdwg.mxu0
    %672 = vmatprep.subr.bf16.mxu0 %v527
    %673 = vmatpush1.bf16.msra.mxu0 %v526
    %674 = vmatprep.subr.bf16.mxu0 %v533
    %675 = vmatpush1.bf16.msra.mxu0 %v532
    %676 = vmatprep.subr.bf16.mxu0 %v539
    %677 = vmatpush1.bf16.msra.mxu0 %v538
    %678 = vmatprep.subr.bf16.mxu0 %v545
    %679 = vmatpush1.bf16.msra.mxu0 %v544
    %680 = vmatprep.subr.bf16.mxu0 %v551
    %681 = vmatpush1.bf16.msra.mxu0 %v550
    %682 = vmatprep.subr.bf16.mxu0 %v557
    %683 = vmatpush1.bf16.msra.mxu0 %v556
    %684 = vmatprep.subr.bf16.mxu0 %v563
    %685 = vmatpush1.bf16.msra.mxu0 %v562
    %686 = vmatprep.subr.bf16.mxu0 %v569
    %687 = vmatpush1.bf16.msra.mxu0 %v568
    %688 = vmatprep.subr.bf16.mxu0 %v575
    %689 = vmatpush1.bf16.msra.mxu0 %v574
    %690 = vmatprep.subr.bf16.mxu0 0
    %691 = vmatpush1.bf16.msra.mxu0 0
    %692 = vmatprep.subr.bf16.mxu0 0
    %693 = vmatpush1.bf16.msra.mxu0 0
    %694 = vmatprep.subr.bf16.mxu0 0
    %695 = vmatpush1.bf16.msra.mxu0 0
    %696 = vmatprep.subr.bf16.mxu0 0
    %697 = vmatpush1.bf16.msra.mxu0 0
    %698 = vmatprep.subr.bf16.mxu0 0
    %699 = vmatpush1.bf16.msra.mxu0 0
    %700 = vmatprep.subr.bf16.mxu0 0
    %701 = vmatpush1.bf16.msra.mxu0 0
    %702 = vmatprep.subr.bf16.mxu0 0
    %703 = vmatpush1.bf16.msra.mxu0 0
    %704 = vmatprep.mubr.bf16.mxu0 %v588
    %705 = vmatmul.mubr.bf16.gmra.mrb[0].mxu0 %v583
    %v706 = vpop.f32.mrb[0].mxu0
    %v707 = vadd.f32 0.0, %v706
    %v708 = vpop.f32.mrb[0].mxu0
    %v709 = vadd.f32 0.0, %v708
    %v710 = vpop.f32.mrb[0].mxu0
    %v711 = vpop.f32.mrb[0].mxu0
    %712 = vdwg.mxu0
    %v714 = vlaneseq
    %v715 = vshrl.u32 %v714, 7
    %v716 = vsub.s32 0, %v715
    %v717 = vrot.slane %v43, %v716
    %v718 = vlaneseq
    %v719 = vshrl.u32 %v718, 7
    %v720 = vsub.s32 1, %v719
    %v721 = vrot.slane %v43, %v720
    %v722 = vlaneseq
    %v723 = vshrl.u32 %v722, 7
    %v724 = vsub.s32 2, %v723
    %v725 = vrot.slane %v43, %v724
    %v726 = vlaneseq
    %v727 = vshrl.u32 %v726, 7
    %v728 = vsub.s32 3, %v727
    %v729 = vrot.slane %v43, %v728
    %v730 = vlaneseq
    %v731 = vshrl.u32 %v730, 7
    %v732 = vsub.s32 4, %v731
    %v733 = vrot.slane %v43, %v732
    %v734 = vlaneseq
    %v735 = vshrl.u32 %v734, 7
    %v736 = vsub.s32 5, %v735
    %v737 = vrot.slane %v43, %v736
    %v744 = vmul.f32 %v625, %v717
    %v745 = vmul.f32 %v627, %v721
    %v746 = vmul.f32 %v666, %v725
    %v747 = vmul.f32 %v668, %v729
    %v748 = vmul.f32 %v707, %v733
    %v749 = vmul.f32 %v709, %v737
    %vm750 = vcmask 1043456
    %v751 = vsel %vm750, %v744, 0.0
    %v752 = vsel %vm750, %v745, 0.0
    %v753 = vadd.f32 %v751, %v752
    %v754 = vsel %vm750, %v746, 0.0
    %v755 = vadd.f32 %v753, %v754
    %v756 = vsel %vm750, %v747, 0.0
    %v757 = vadd.f32 %v755, %v756
    %v758 = vsel %vm750, %v748, 0.0
    %v759 = vadd.f32 %v757, %v758
    %v760 = vsel %vm146, %v749, 0.0
    %v761 = vadd.f32 %v759, %v760
    %762 = vadd.xlane.f32.xlu0 %v761
    %v763 = vpop.xlane.xlu0 %762
    %v764 = vmul.f32 %v625, %v744
    %v765 = vmul.f32 %v627, %v745
    %v766 = vmul.f32 %v666, %v746
    %v767 = vmul.f32 %v668, %v747
    %v768 = vmul.f32 %v707, %v748
    %v769 = vmul.f32 %v709, %v749
    %v770 = vsel %vm750, %v764, 0.0
    %v771 = vsel %vm750, %v765, 0.0
    %v772 = vadd.f32 %v770, %v771
    %v773 = vsel %vm750, %v766, 0.0
    %v774 = vadd.f32 %v772, %v773
    %v775 = vsel %vm750, %v767, 0.0
    %v776 = vadd.f32 %v774, %v775
    %v777 = vsel %vm750, %v768, 0.0
    %v778 = vadd.f32 %v776, %v777
    %v779 = vsel %vm146, %v769, 0.0
    %v780 = vadd.f32 %v778, %v779
    %781 = vadd.xlane.f32.xlu0 %v780
    %v782 = vpop.xlane.xlu0 %781
    %v783 = vmul.f32 %v763, 0.001953125
    %v784 = vmul.f32 %v782, 0.001953125
    %v785 = vmul.f32 %v783, %v783
    %v786 = vsub.f32 %v784, %v785
    %v787 = vsub.f32 %v625, %v783
    %v788 = vsub.f32 %v627, %v783
    %v789 = vsub.f32 %v666, %v783
    %v790 = vsub.f32 %v668, %v783
    %v791 = vsub.f32 %v707, %v783
    %v792 = vsub.f32 %v709, %v783
    %v793 = vadd.f32 %v786, 1e-05
    %v794 = vrsqrt.pop %v793
    %v795 = vmul.f32 %v787, %v794
    %v796 = vmul.f32 %v788, %v794
    %v797 = vmul.f32 %v789, %v794
    %v798 = vmul.f32 %v790, %v794
    %v799 = vmul.f32 %v791, %v794
    %v800 = vmul.f32 %v792, %v794
    %v801 = vld [vmem:[%s3] sm:$0xf]
    %803 = vset.pattern.permute.xlu0 0
    %804 = vperm.xlu0 %803, %v801
    %v805 = vpop.permute.xlu0 %804
    %v807 = vmul.f32 %v795, %v805
    %v808 = vmul.f32 %v796, %v805
    %v809 = vmul.f32 %v797, %v805
    %v810 = vmul.f32 %v798, %v805
    %v811 = vmul.f32 %v799, %v805
    %v812 = vmul.f32 %v800, %v805
    %v813 = vld [vmem:[%s4] sm:$0xf]
    %815 = vset.pattern.permute.xlu0 0
    %816 = vperm.xlu0 %815, %v813
    %v817 = vpop.permute.xlu0 %816
    %v819 = vadd.f32 %v807, %v817
    %v820 = vadd.f32 %v808, %v817
    %v821 = vadd.f32 %v809, %v817
    %v822 = vadd.f32 %v810, %v817
    %v823 = vadd.f32 %v811, %v817
    %v824 = vadd.f32 %v812, %v817
    %v825 = vmax.f32 %v819, 0.0
    %v826 = vmax.f32 %v820, 0.0
    %v827 = vmax.f32 %v821, 0.0
    %v828 = vmax.f32 %v822, 0.0
    %v829 = vmax.f32 %v823, 0.0
    %v830 = vmax.f32 %v824, 0.0
    %831 = vst [vmem:[#allocation3] sm:$0x3] 0
    %vm832 = vcmask 1041472
    %vm833 = vcmask 60418
    %vm834 = vmor %vm833, %vm832
    %835 = vst.msk [vmem:[#allocation3 + $0xc] sm:$0xf] %vm834, 0
    %v836 = vmul.f32 %v825, %v717
    %v837 = vmul.f32 %v826, %v721
    %v838 = vmul.f32 %v827, %v725
    %v839 = vmul.f32 %v828, %v729
    %v840 = vmul.f32 %v829, %v733
    %v841 = vmul.f32 %v830, %v737
    %v842 = vpack.c.bf16 %v836, %v836
    %v843 = vpack.c.bf16 %v837, %v837
    %v844 = vpack.c.bf16 %v838, %v838
    %v845 = vpack.c.bf16 %v839, %v839
    %v846 = vpack.c.bf16 %v840, %v840
    %v847 = vpack.c.bf16 %v841, %v841
    %v854 = vcombine.low %v842, %v843
    %v855 = vcombine.low %v844, %v845
    %v857 = vunpack.c.l.s4 1983009808
    %v858 = vunpack.c.0.s8 %v857
    %v859 = vlaneseq
    %v860 = vshrl.u32 %v859, 7
    %v861 = vsub.s32 %v858, %v860
    %v862 = vrot.slane %v854, %v861
    %v864 = vunpack.c.l.s4 1983009808
    %v865 = vunpack.c.0.s8 %v864
    %v866 = vlaneseq
    %v867 = vshrl.u32 %v866, 7
    %v868 = vsub.s32 %v865, %v867
    %v869 = vrot.slane %v855, %v868
    %v870 = vcombine.low %v862, %v869
    %v871 = vcombine.low %v846, %v847
    %v873 = vunpack.c.l.s4 1983009808
    %v874 = vunpack.c.0.s8 %v873
    %v875 = vlaneseq
    %v876 = vshrl.u32 %v875, 7
    %v877 = vsub.s32 %v874, %v876
    %v878 = vrot.slane %v871, %v877
    %881 = vst [vmem:[#allocation3 + $0x2] sm:$0xff] %v870
    %vm882 = vcmask 1041408
    %vm883 = vmor %vm833, %vm882
    %884 = vst.msk [vmem:[#allocation3 + $0xa] sm:$0xf] %vm883, %v878
    %v885 = vld [vmem:[#allocation3] sm:$0xff]
    %v886 = vld [vmem:[#allocation3 + $0x8] sm:$0xf]
    %v889 = vcombine.high %v885, %v885
    %v891 = vunpack.c.l.s4 1983009808
    %v892 = vunpack.c.0.s8 %v891
    %v893 = vlaneseq
    %v894 = vshrl.u32 %v893, 7
    %v895 = vsub.s32 %v892, %v894
    %v896 = vrot.slane %v885, %v895
    %v898 = vunpack.c.l.s4 1983009808
    %v899 = vunpack.c.0.s8 %v898
    %v900 = vlaneseq
    %v901 = vshrl.u32 %v900, 7
    %v902 = vsub.s32 %v899, %v901
    %v903 = vrot.slane %v889, %v902
    %v904 = vcombine.high %v896, %v896
    %v905 = vcombine.high %v903, %v903
    %v907 = vunpack.c.l.s4 1983009808
    %v908 = vunpack.c.0.s8 %v907
    %v909 = vlaneseq
    %v910 = vshrl.u32 %v909, 7
    %v911 = vsub.s32 %v908, %v910
    %v912 = vrot.slane %v886, %v911
    %v913 = vcombine.high %v912, %v912
    %914 = vrot.lane.b32.xlu0 %v896, 19
    %v915 = vpop.permute.xlu0 %914
    %916 = vrot.lane.b32.xlu0 %v904, 19
    %v917 = vpop.permute.xlu0 %916
    %918 = vrot.lane.b32.xlu0 %v903, 19
    %v919 = vpop.permute.xlu0 %918
    %920 = vrot.lane.b32.xlu0 %v905, 19
    %v921 = vpop.permute.xlu0 %920
    %922 = vrot.lane.b32.xlu0 %v912, 19
    %v923 = vpop.permute.xlu0 %922
    %924 = vrot.lane.b32.xlu0 %v913, 19
    %v925 = vpop.permute.xlu0 %924
    %v926 = vsel %vm129, %v915, %v917
    %v927 = vsel %vm129, %v917, %v919
    %v928 = vsel %vm129, %v919, %v921
    %v929 = vsel %vm129, %v921, %v923
    %v930 = vsel %vm129, %v923, %v925
    %937 = vst [vmem:[#allocation2] sm:$0x3] %v926
    %938 = vst [vmem:[#allocation2 + $0x8] sm:$0x3] %v927
    %939 = vst [vmem:[#allocation2 + $0x10] sm:$0x3] %v928
    %940 = vst [vmem:[#allocation2 + $0x18] sm:$0x3] %v929
    %941 = vst [vmem:[#allocation2 + $0x20] sm:$0x3] %v930
    %vm942 = vcmask 58368
    %943 = vst.msk [vmem:[#allocation2 + $0x28] sm:$0x3] %vm942, %v925
    %v944 = vld [vmem:[#allocation3] sm:$0xff]
    %v945 = vld [vmem:[#allocation3 + $0x8] sm:$0xf]
    %v948 = vcombine.high %v944, %v944
    %v950 = vunpack.c.l.s4 1983009808
    %v951 = vunpack.c.0.s8 %v950
    %v952 = vlaneseq
    %v953 = vshrl.u32 %v952, 7
    %v954 = vsub.s32 %v951, %v953
    %v955 = vrot.slane %v944, %v954
    %v957 = vunpack.c.l.s4 1983009808
    %v958 = vunpack.c.0.s8 %v957
    %v959 = vlaneseq
    %v960 = vshrl.u32 %v959, 7
    %v961 = vsub.s32 %v958, %v960
    %v962 = vrot.slane %v948, %v961
    %v963 = vcombine.high %v955, %v955
    %v964 = vcombine.high %v962, %v962
    %v966 = vunpack.c.l.s4 1983009808
    %v967 = vunpack.c.0.s8 %v966
    %v968 = vlaneseq
    %v969 = vshrl.u32 %v968, 7
    %v970 = vsub.s32 %v967, %v969
    %v971 = vrot.slane %v945, %v970
    %v972 = vcombine.high %v971, %v971
    %973 = vrot.lane.b32.xlu0 %v955, 18
    %v974 = vpop.permute.xlu0 %973
    %975 = vrot.lane.b32.xlu0 %v963, 18
    %v976 = vpop.permute.xlu0 %975
    %977 = vrot.lane.b32.xlu0 %v962, 18
    %v978 = vpop.permute.xlu0 %977
    %979 = vrot.lane.b32.xlu0 %v964, 18
    %v980 = vpop.permute.xlu0 %979
    %981 = vrot.lane.b32.xlu0 %v971, 18
    %v982 = vpop.permute.xlu0 %981
    %983 = vrot.lane.b32.xlu0 %v972, 18
    %v984 = vpop.permute.xlu0 %983
    %v985 = vsel %vm178, %v974, %v976
    %v986 = vsel %vm178, %v976, %v978
    %v987 = vsel %vm178, %v978, %v980
    %v988 = vsel %vm178, %v980, %v982
    %v989 = vsel %vm178, %v982, %v984
    %996 = vst [vmem:[#allocation2 + $0x30] sm:$0x3] %v985
    %997 = vst [vmem:[#allocation2 + $0x38] sm:$0x3] %v986
    %998 = vst [vmem:[#allocation2 + $0x40] sm:$0x3] %v987
    %999 = vst [vmem:[#allocation2 + $0x48] sm:$0x3] %v988
    %1000 = vst [vmem:[#allocation2 + $0x50] sm:$0x3] %v989
    %1001 = vst.msk [vmem:[#allocation2 + $0x58] sm:$0x3] %vm942, %v984
    %v1002 = vld [vmem:[#allocation3] sm:$0xff]
    %v1003 = vld [vmem:[#allocation3 + $0x8] sm:$0xf]
    %v1006 = vcombine.high %v1002, %v1002
    %v1008 = vunpack.c.l.s4 1983009808
    %v1009 = vunpack.c.0.s8 %v1008
    %v1010 = vlaneseq
    %v1011 = vshrl.u32 %v1010, 7
    %v1012 = vsub.s32 %v1009, %v1011
    %v1013 = vrot.slane %v1002, %v1012
    %v1015 = vunpack.c.l.s4 1983009808
    %v1016 = vunpack.c.0.s8 %v1015
    %v1017 = vlaneseq
    %v1018 = vshrl.u32 %v1017, 7
    %v1019 = vsub.s32 %v1016, %v1018
    %v1020 = vrot.slane %v1006, %v1019
    %v1021 = vcombine.high %v1013, %v1013
    %v1022 = vcombine.high %v1020, %v1020
    %v1024 = vunpack.c.l.s4 1983009808
    %v1025 = vunpack.c.0.s8 %v1024
    %v1026 = vlaneseq
    %v1027 = vshrl.u32 %v1026, 7
    %v1028 = vsub.s32 %v1025, %v1027
    %v1029 = vrot.slane %v1003, %v1028
    %v1030 = vcombine.high %v1029, %v1029
    %1031 = vrot.lane.b32.xlu0 %v1013, 17
    %v1032 = vpop.permute.xlu0 %1031
    %1033 = vrot.lane.b32.xlu0 %v1021, 17
    %v1034 = vpop.permute.xlu0 %1033
    %1035 = vrot.lane.b32.xlu0 %v1020, 17
    %v1036 = vpop.permute.xlu0 %1035
    %1037 = vrot.lane.b32.xlu0 %v1022, 17
    %v1038 = vpop.permute.xlu0 %1037
    %1039 = vrot.lane.b32.xlu0 %v1029, 17
    %v1040 = vpop.permute.xlu0 %1039
    %1041 = vrot.lane.b32.xlu0 %v1030, 17
    %v1042 = vpop.permute.xlu0 %1041
    %v1043 = vsel %vm226, %v1032, %v1034
    %v1044 = vsel %vm226, %v1034, %v1036
    %v1045 = vsel %vm226, %v1036, %v1038
    %v1046 = vsel %vm226, %v1038, %v1040
    %v1047 = vsel %vm226, %v1040, %v1042
    %1054 = vst [vmem:[#allocation2 + $0x60] sm:$0x3] %v1043
    %1055 = vst [vmem:[#allocation2 + $0x68] sm:$0x3] %v1044
    %1056 = vst [vmem:[#allocation2 + $0x70] sm:$0x3] %v1045
    %1057 = vst [vmem:[#allocation2 + $0x78] sm:$0x3] %v1046
    %1058 = vst [vmem:[#allocation2 + $0x80] sm:$0x3] %v1047
    %1059 = vst.msk [vmem:[#allocation2 + $0x88] sm:$0x3] %vm942, %v1042
    %v1060 = vld [vmem:[#allocation3] sm:$0xff]
    %v1061 = vld [vmem:[#allocation3 + $0x8] sm:$0x3f]
    %v1064 = vcombine.high %v1060, %v1060
    %v1066 = vunpack.c.l.s4 1983009808
    %v1067 = vunpack.c.0.s8 %v1066
    %v1068 = vlaneseq
    %v1069 = vshrl.u32 %v1068, 7
    %v1070 = vsub.s32 %v1067, %v1069
    %v1071 = vrot.slane %v1060, %v1070
    %v1073 = vunpack.c.l.s4 1983009808
    %v1074 = vunpack.c.0.s8 %v1073
    %v1075 = vlaneseq
    %v1076 = vshrl.u32 %v1075, 7
    %v1077 = vsub.s32 %v1074, %v1076
    %v1078 = vrot.slane %v1064, %v1077
    %v1079 = vcombine.high %v1071, %v1071
    %v1080 = vcombine.high %v1078, %v1078
    %v1081 = vcombine.high %v1061, %v1061
    %v1083 = vunpack.c.l.s4 1983009808
    %v1084 = vunpack.c.0.s8 %v1083
    %v1085 = vlaneseq
    %v1086 = vshrl.u32 %v1085, 7
    %v1087 = vsub.s32 %v1084, %v1086
    %v1088 = vrot.slane %v1061, %v1087
    %v1090 = vunpack.c.l.s4 1983009808
    %v1091 = vunpack.c.0.s8 %v1090
    %v1092 = vlaneseq
    %v1093 = vshrl.u32 %v1092, 7
    %v1094 = vsub.s32 %v1091, %v1093
    %v1095 = vrot.slane %v1081, %v1094
    %v1096 = vcombine.high %v1088, %v1088
    %1097 = vrot.lane.b32.xlu0 %v1071, 1
    %v1098 = vpop.permute.xlu0 %1097
    %1099 = vrot.lane.b32.xlu0 %v1079, 1
    %v1100 = vpop.permute.xlu0 %1099
    %1101 = vrot.lane.b32.xlu0 %v1078, 1
    %v1102 = vpop.permute.xlu0 %1101
    %1103 = vrot.lane.b32.xlu0 %v1080, 1
    %v1104 = vpop.permute.xlu0 %1103
    %1105 = vrot.lane.b32.xlu0 %v1088, 1
    %v1106 = vpop.permute.xlu0 %1105
    %1107 = vrot.lane.b32.xlu0 %v1096, 1
    %v1108 = vpop.permute.xlu0 %1107
    %1109 = vrot.lane.b32.xlu0 %v1095, 1
    %v1110 = vpop.permute.xlu0 %1109
    %v1111 = vsel %vm280, %v1098, %v1100
    %v1112 = vsel %vm280, %v1100, %v1102
    %v1113 = vsel %vm280, %v1102, %v1104
    %v1114 = vsel %vm280, %v1104, %v1106
    %v1115 = vsel %vm280, %v1106, %v1108
    %v1116 = vsel %vm280, %v1108, %v1110
    %1123 = vst [vmem:[#allocation2 + $0x90] sm:$0x3] %v1111
    %1124 = vst [vmem:[#allocation2 + $0x98] sm:$0x3] %v1112
    %1125 = vst [vmem:[#allocation2 + $0xa0] sm:$0x3] %v1113
    %1126 = vst [vmem:[#allocation2 + $0xa8] sm:$0x3] %v1114
    %1127 = vst [vmem:[#allocation2 + $0xb0] sm:$0x3] %v1115
    %1128 = vst.msk [vmem:[#allocation2 + $0xb8] sm:$0x3] %vm942, %v1116
    %v1129 = vld [vmem:[#allocation3 + $0x2] sm:$0xff]
    %v1130 = vld [vmem:[#allocation3 + $0xa] sm:$0xf]
    %v1133 = vcombine.high %v1129, %v1129
    %v1135 = vunpack.c.l.s4 1983009808
    %v1136 = vunpack.c.0.s8 %v1135
    %v1137 = vlaneseq
    %v1138 = vshrl.u32 %v1137, 7
    %v1139 = vsub.s32 %v1136, %v1138
    %v1140 = vrot.slane %v1129, %v1139
    %v1142 = vunpack.c.l.s4 1983009808
    %v1143 = vunpack.c.0.s8 %v1142
    %v1144 = vlaneseq
    %v1145 = vshrl.u32 %v1144, 7
    %v1146 = vsub.s32 %v1143, %v1145
    %v1147 = vrot.slane %v1133, %v1146
    %v1148 = vcombine.high %v1140, %v1140
    %v1149 = vcombine.high %v1147, %v1147
    %v1151 = vunpack.c.l.s4 1983009808
    %v1152 = vunpack.c.0.s8 %v1151
    %v1153 = vlaneseq
    %v1154 = vshrl.u32 %v1153, 7
    %v1155 = vsub.s32 %v1152, %v1154
    %v1156 = vrot.slane %v1130, %v1155
    %v1157 = vcombine.high %v1156, %v1156
    %1164 = vst [vmem:[#allocation2 + $0xc0] sm:$0x3] %v1140
    %1165 = vst [vmem:[#allocation2 + $0xc8] sm:$0x3] %v1148
    %1166 = vst [vmem:[#allocation2 + $0xd0] sm:$0x3] %v1147
    %1167 = vst [vmem:[#allocation2 + $0xd8] sm:$0x3] %v1149
    %1168 = vst [vmem:[#allocation2 + $0xe0] sm:$0x3] %v1156
    %1169 = vst.msk [vmem:[#allocation2 + $0xe8] sm:$0x3] %vm942, %v1157
    %v1170 = vld [vmem:[#allocation3 + $0x2] sm:$0xff]
    %v1171 = vld [vmem:[#allocation3 + $0xa] sm:$0xf]
    %v1174 = vcombine.high %v1170, %v1170
    %v1176 = vunpack.c.l.s4 1983009808
    %v1177 = vunpack.c.0.s8 %v1176
    %v1178 = vlaneseq
    %v1179 = vshrl.u32 %v1178, 7
    %v1180 = vsub.s32 %v1177, %v1179
    %v1181 = vrot.slane %v1170, %v1180
    %v1183 = vunpack.c.l.s4 1983009808
    %v1184 = vunpack.c.0.s8 %v1183
    %v1185 = vlaneseq
    %v1186 = vshrl.u32 %v1185, 7
    %v1187 = vsub.s32 %v1184, %v1186
    %v1188 = vrot.slane %v1174, %v1187
    %v1189 = vcombine.high %v1181, %v1181
    %v1190 = vcombine.high %v1188, %v1188
    %v1192 = vunpack.c.l.s4 1983009808
    %v1193 = vunpack.c.0.s8 %v1192
    %v1194 = vlaneseq
    %v1195 = vshrl.u32 %v1194, 7
    %v1196 = vsub.s32 %v1193, %v1195
    %v1197 = vrot.slane %v1171, %v1196
    %v1198 = vcombine.high %v1197, %v1197
    %1199 = vrot.lane.b32.xlu0 %v1181, 127
    %v1200 = vpop.permute.xlu0 %1199
    %1201 = vrot.lane.b32.xlu0 %v1189, 127
    %v1202 = vpop.permute.xlu0 %1201
    %1203 = vrot.lane.b32.xlu0 %v1188, 127
    %v1204 = vpop.permute.xlu0 %1203
    %1205 = vrot.lane.b32.xlu0 %v1190, 127
    %v1206 = vpop.permute.xlu0 %1205
    %1207 = vrot.lane.b32.xlu0 %v1197, 127
    %v1208 = vpop.permute.xlu0 %1207
    %1209 = vrot.lane.b32.xlu0 %v1198, 127
    %v1210 = vpop.permute.xlu0 %1209
    %v1211 = vsel %vm359, %v1200, %v1202
    %v1212 = vsel %vm359, %v1202, %v1204
    %v1213 = vsel %vm359, %v1204, %v1206
    %v1214 = vsel %vm359, %v1206, %v1208
    %v1215 = vsel %vm359, %v1208, %v1210
    %1222 = vst [vmem:[#allocation2 + $0xf0] sm:$0x3] %v1211
    %1223 = vst [vmem:[#allocation2 + $0xf8] sm:$0x3] %v1212
    %1224 = vst [vmem:[#allocation2 + $0x100] sm:$0x3] %v1213
    %1225 = vst [vmem:[#allocation2 + $0x108] sm:$0x3] %v1214
    %1226 = vst [vmem:[#allocation2 + $0x110] sm:$0x3] %v1215
    %1227 = vst.msk [vmem:[#allocation2 + $0x118] sm:$0x3] %vm942, %v1210
    %v1228 = vld [vmem:[#allocation3 + $0x2] sm:$0xff]
    %v1229 = vld [vmem:[#allocation3 + $0xa] sm:$0xf]
    %v1232 = vcombine.high %v1228, %v1228
    %v1234 = vunpack.c.l.s4 1983009808
    %v1235 = vunpack.c.0.s8 %v1234
    %v1236 = vlaneseq
    %v1237 = vshrl.u32 %v1236, 7
    %v1238 = vsub.s32 %v1235, %v1237
    %v1239 = vrot.slane %v1228, %v1238
    %v1241 = vunpack.c.l.s4 1983009808
    %v1242 = vunpack.c.0.s8 %v1241
    %v1243 = vlaneseq
    %v1244 = vshrl.u32 %v1243, 7
    %v1245 = vsub.s32 %v1242, %v1244
    %v1246 = vrot.slane %v1232, %v1245
    %v1247 = vcombine.high %v1239, %v1239
    %v1248 = vcombine.high %v1246, %v1246
    %v1250 = vunpack.c.l.s4 1983009808
    %v1251 = vunpack.c.0.s8 %v1250
    %v1252 = vlaneseq
    %v1253 = vshrl.u32 %v1252, 7
    %v1254 = vsub.s32 %v1251, %v1253
    %v1255 = vrot.slane %v1229, %v1254
    %v1256 = vcombine.high %v1255, %v1255
    %1257 = vrot.lane.b32.xlu0 %v1239, 111
    %v1258 = vpop.permute.xlu0 %1257
    %1259 = vrot.lane.b32.xlu0 %v1247, 111
    %v1260 = vpop.permute.xlu0 %1259
    %1261 = vrot.lane.b32.xlu0 %v1246, 111
    %v1262 = vpop.permute.xlu0 %1261
    %1263 = vrot.lane.b32.xlu0 %v1248, 111
    %v1264 = vpop.permute.xlu0 %1263
    %1265 = vrot.lane.b32.xlu0 %v1255, 111
    %v1266 = vpop.permute.xlu0 %1265
    %1267 = vrot.lane.b32.xlu0 %v1256, 111
    %v1268 = vpop.permute.xlu0 %1267
    %v1269 = vsel %vm407, %v1258, %v1260
    %v1270 = vsel %vm407, %v1260, %v1262
    %v1271 = vsel %vm407, %v1262, %v1264
    %v1272 = vsel %vm407, %v1264, %v1266
    %v1273 = vsel %vm407, %v1266, %v1268
    %1280 = vst [vmem:[#allocation2 + $0x120] sm:$0x3] %v1269
    %1281 = vst [vmem:[#allocation2 + $0x128] sm:$0x3] %v1270
    %1282 = vst [vmem:[#allocation2 + $0x130] sm:$0x3] %v1271
    %1283 = vst [vmem:[#allocation2 + $0x138] sm:$0x3] %v1272
    %1284 = vst [vmem:[#allocation2 + $0x140] sm:$0x3] %v1273
    %1285 = vst.msk [vmem:[#allocation2 + $0x148] sm:$0x3] %vm942, %v1268
    %v1286 = vld [vmem:[#allocation3 + $0x2] sm:$0xff]
    %v1287 = vld [vmem:[#allocation3 + $0xa] sm:$0xf]
    %v1290 = vcombine.high %v1286, %v1286
    %v1292 = vunpack.c.l.s4 1983009808
    %v1293 = vunpack.c.0.s8 %v1292
    %v1294 = vlaneseq
    %v1295 = vshrl.u32 %v1294, 7
    %v1296 = vsub.s32 %v1293, %v1295
    %v1297 = vrot.slane %v1286, %v1296
    %v1299 = vunpack.c.l.s4 1983009808
    %v1300 = vunpack.c.0.s8 %v1299
    %v1301 = vlaneseq
    %v1302 = vshrl.u32 %v1301, 7
    %v1303 = vsub.s32 %v1300, %v1302
    %v1304 = vrot.slane %v1290, %v1303
    %v1305 = vcombine.high %v1297, %v1297
    %v1306 = vcombine.high %v1304, %v1304
    %v1308 = vunpack.c.l.s4 1983009808
    %v1309 = vunpack.c.0.s8 %v1308
    %v1310 = vlaneseq
    %v1311 = vshrl.u32 %v1310, 7
    %v1312 = vsub.s32 %v1309, %v1311
    %v1313 = vrot.slane %v1287, %v1312
    %v1314 = vcombine.high %v1313, %v1313
    %1315 = vrot.lane.b32.xlu0 %v1297, 110
    %v1316 = vpop.permute.xlu0 %1315
    %1317 = vrot.lane.b32.xlu0 %v1305, 110
    %v1318 = vpop.permute.xlu0 %1317
    %1319 = vrot.lane.b32.xlu0 %v1304, 110
    %v1320 = vpop.permute.xlu0 %1319
    %1321 = vrot.lane.b32.xlu0 %v1306, 110
    %v1322 = vpop.permute.xlu0 %1321
    %1323 = vrot.lane.b32.xlu0 %v1313, 110
    %v1324 = vpop.permute.xlu0 %1323
    %1325 = vrot.lane.b32.xlu0 %v1314, 110
    %v1326 = vpop.permute.xlu0 %1325
    %v1327 = vsel %vm455, %v1316, %v1318
    %v1328 = vsel %vm455, %v1318, %v1320
    %v1329 = vsel %vm455, %v1320, %v1322
    %v1330 = vsel %vm455, %v1322, %v1324
    %v1331 = vsel %vm455, %v1324, %v1326
    %1338 = vst [vmem:[#allocation2 + $0x150] sm:$0x3] %v1327
    %1339 = vst [vmem:[#allocation2 + $0x158] sm:$0x3] %v1328
    %1340 = vst [vmem:[#allocation2 + $0x160] sm:$0x3] %v1329
    %1341 = vst [vmem:[#allocation2 + $0x168] sm:$0x3] %v1330
    %1342 = vst [vmem:[#allocation2 + $0x170] sm:$0x3] %v1331
    %1343 = vst.msk [vmem:[#allocation2 + $0x178] sm:$0x3] %vm942, %v1326
    %v1344 = vld [vmem:[#allocation3 + $0x2] sm:$0xff]
    %v1345 = vld [vmem:[#allocation3 + $0xa] sm:$0xf]
    %v1348 = vcombine.high %v1344, %v1344
    %v1350 = vunpack.c.l.s4 1983009808
    %v1351 = vunpack.c.0.s8 %v1350
    %v1352 = vlaneseq
    %v1353 = vshrl.u32 %v1352, 7
    %v1354 = vsub.s32 %v1351, %v1353
    %v1355 = vrot.slane %v1344, %v1354
    %v1357 = vunpack.c.l.s4 1983009808
    %v1358 = vunpack.c.0.s8 %v1357
    %v1359 = vlaneseq
    %v1360 = vshrl.u32 %v1359, 7
    %v1361 = vsub.s32 %v1358, %v1360
    %v1362 = vrot.slane %v1348, %v1361
    %v1363 = vcombine.high %v1355, %v1355
    %v1364 = vcombine.high %v1362, %v1362
    %v1366 = vunpack.c.l.s4 1983009808
    %v1367 = vunpack.c.0.s8 %v1366
    %v1368 = vlaneseq
    %v1369 = vshrl.u32 %v1368, 7
    %v1370 = vsub.s32 %v1367, %v1369
    %v1371 = vrot.slane %v1345, %v1370
    %v1372 = vcombine.high %v1371, %v1371
    %1373 = vrot.lane.b32.xlu0 %v1355, 109
    %v1374 = vpop.permute.xlu0 %1373
    %1375 = vrot.lane.b32.xlu0 %v1363, 109
    %v1376 = vpop.permute.xlu0 %1375
    %1377 = vrot.lane.b32.xlu0 %v1362, 109
    %v1378 = vpop.permute.xlu0 %1377
    %1379 = vrot.lane.b32.xlu0 %v1364, 109
    %v1380 = vpop.permute.xlu0 %1379
    %1381 = vrot.lane.b32.xlu0 %v1371, 109
    %v1382 = vpop.permute.xlu0 %1381
    %1383 = vrot.lane.b32.xlu0 %v1372, 109
    %v1384 = vpop.permute.xlu0 %1383
    %v1385 = vsel %vm503, %v1374, %v1376
    %v1386 = vsel %vm503, %v1376, %v1378
    %v1387 = vsel %vm503, %v1378, %v1380
    %v1388 = vsel %vm503, %v1380, %v1382
    %v1389 = vsel %vm503, %v1382, %v1384
    %1396 = vst [vmem:[#allocation2 + $0x180] sm:$0x3] %v1385
    %1397 = vst [vmem:[#allocation2 + $0x188] sm:$0x3] %v1386
    %1398 = vst [vmem:[#allocation2 + $0x190] sm:$0x3] %v1387
    %1399 = vst [vmem:[#allocation2 + $0x198] sm:$0x3] %v1388
    %1400 = vst [vmem:[#allocation2 + $0x1a0] sm:$0x3] %v1389
    %1401 = vst.msk [vmem:[#allocation2 + $0x1a8] sm:$0x3] %vm942, %v1384
    %v1402 = vld [vmem:[%s5] sm:$0xf]
    %v1403 = vld [vmem:[#allocation2] sm:$0xff]
    %v1404 = vld [vmem:[#allocation2 + $0x8] sm:$0xff]
    %v1405 = vld [vmem:[#allocation2 + $0x10] sm:$0xff]
    %v1406 = vld [vmem:[#allocation2 + $0x18] sm:$0xff]
    %v1407 = vld [vmem:[#allocation2 + $0x20] sm:$0xff]
    %v1408 = vld [vmem:[#allocation2 + $0x28] sm:$0xff]
    %v1409 = vld [vmem:[#allocation2 + $0x30] sm:$0xff]
    %v1410 = vld [vmem:[#allocation2 + $0x38] sm:$0xff]
    %v1411 = vld [vmem:[#allocation2 + $0x40] sm:$0xff]
    %v1412 = vld [vmem:[#allocation2 + $0x48] sm:$0xff]
    %v1413 = vld [vmem:[#allocation2 + $0x50] sm:$0xff]
    %v1414 = vld [vmem:[#allocation2 + $0x58] sm:$0xff]
    %v1415 = vld [vmem:[#allocation2 + $0x60] sm:$0xff]
    %v1416 = vld [vmem:[#allocation2 + $0x68] sm:$0xff]
    %v1417 = vld [vmem:[#allocation2 + $0x70] sm:$0xff]
    %v1418 = vld [vmem:[#allocation2 + $0x78] sm:$0xff]
    %v1419 = vld [vmem:[#allocation2 + $0x80] sm:$0xff]
    %v1420 = vld [vmem:[#allocation2 + $0x88] sm:$0xff]
    %v1421 = vld [vmem:[#allocation2 + $0x90] sm:$0xff]
    %v1422 = vld [vmem:[#allocation2 + $0x98] sm:$0xff]
    %v1423 = vld [vmem:[#allocation2 + $0xa0] sm:$0xff]
    %v1424 = vld [vmem:[#allocation2 + $0xa8] sm:$0xff]
    %v1425 = vld [vmem:[#allocation2 + $0xb0] sm:$0xff]
    %v1426 = vld [vmem:[#allocation2 + $0xb8] sm:$0xff]
    %v1427 = vld [vmem:[#allocation2 + $0xc0] sm:$0xff]
    %v1428 = vld [vmem:[#allocation2 + $0xc8] sm:$0xff]
    %v1429 = vld [vmem:[#allocation2 + $0xd0] sm:$0xff]
    %v1430 = vld [vmem:[#allocation2 + $0xd8] sm:$0xff]
    %v1431 = vld [vmem:[#allocation2 + $0xe0] sm:$0xff]
    %v1432 = vld [vmem:[#allocation2 + $0xe8] sm:$0xff]
    %v1433 = vld [vmem:[#allocation2 + $0xf0] sm:$0xff]
    %v1434 = vld [vmem:[#allocation2 + $0xf8] sm:$0xff]
    %v1435 = vld [vmem:[#allocation2 + $0x100] sm:$0xff]
    %v1436 = vld [vmem:[#allocation2 + $0x108] sm:$0xff]
    %v1437 = vld [vmem:[#allocation2 + $0x110] sm:$0xff]
    %v1438 = vld [vmem:[#allocation2 + $0x118] sm:$0xff]
    %v1439 = vld [vmem:[#allocation2 + $0x120] sm:$0xff]
    %v1440 = vld [vmem:[#allocation2 + $0x128] sm:$0xff]
    %v1441 = vld [vmem:[#allocation2 + $0x130] sm:$0xff]
    %v1442 = vld [vmem:[#allocation2 + $0x138] sm:$0xff]
    %v1443 = vld [vmem:[#allocation2 + $0x140] sm:$0xff]
    %v1444 = vld [vmem:[#allocation2 + $0x148] sm:$0xff]
    %v1445 = vld [vmem:[#allocation2 + $0x150] sm:$0xff]
    %v1446 = vld [vmem:[#allocation2 + $0x158] sm:$0xff]
    %v1447 = vld [vmem:[#allocation2 + $0x160] sm:$0xff]
    %v1448 = vld [vmem:[#allocation2 + $0x168] sm:$0xff]
    %v1449 = vld [vmem:[#allocation2 + $0x170] sm:$0xff]
    %v1450 = vld [vmem:[#allocation2 + $0x178] sm:$0xff]
    %v1451 = vld [vmem:[#allocation2 + $0x180] sm:$0xff]
    %v1452 = vld [vmem:[#allocation2 + $0x188] sm:$0xff]
    %v1453 = vld [vmem:[#allocation2 + $0x190] sm:$0xff]
    %v1454 = vld [vmem:[#allocation2 + $0x198] sm:$0xff]
    %v1455 = vld [vmem:[#allocation2 + $0x1a0] sm:$0xff]
    %v1456 = vld [vmem:[#allocation2 + $0x1a8] sm:$0xff]
    %v1459 = vunpack.c.l.s4 1983009808
    %v1460 = vunpack.c.0.s8 %v1459
    %v1461 = vlaneseq
    %v1462 = vshrl.u32 %v1461, 7
    %v1463 = vsub.s32 %v1460, %v1462
    %v1464 = vrot.slane %v1402, %v1463
    %v1465 = vcombine.high %v1464, %v1464
    %v1468 = vsel %vm586, %v1465, 0
    %1470 = vmatprep.subr.bf16.mxu0 %v1404
    %1471 = vmatpush1.bf16.msra.mxu0 %v1403
    %1472 = vmatprep.subr.bf16.mxu0 %v1410
    %1473 = vmatpush1.bf16.msra.mxu0 %v1409
    %1474 = vmatprep.subr.bf16.mxu0 %v1416
    %1475 = vmatpush1.bf16.msra.mxu0 %v1415
    %1476 = vmatprep.subr.bf16.mxu0 %v1422
    %1477 = vmatpush1.bf16.msra.mxu0 %v1421
    %1478 = vmatprep.subr.bf16.mxu0 %v1428
    %1479 = vmatpush1.bf16.msra.mxu0 %v1427
    %1480 = vmatprep.subr.bf16.mxu0 %v1434
    %1481 = vmatpush1.bf16.msra.mxu0 %v1433
    %1482 = vmatprep.subr.bf16.mxu0 %v1440
    %1483 = vmatpush1.bf16.msra.mxu0 %v1439
    %1484 = vmatprep.subr.bf16.mxu0 %v1446
    %1485 = vmatpush1.bf16.msra.mxu0 %v1445
    %1486 = vmatprep.subr.bf16.mxu0 %v1452
    %1487 = vmatpush1.bf16.msra.mxu0 %v1451
    %1488 = vmatprep.subr.bf16.mxu0 0
    %1489 = vmatpush1.bf16.msra.mxu0 0
    %1490 = vmatprep.subr.bf16.mxu0 0
    %1491 = vmatpush1.bf16.msra.mxu0 0
    %1492 = vmatprep.subr.bf16.mxu0 0
    %1493 = vmatpush1.bf16.msra.mxu0 0
    %1494 = vmatprep.subr.bf16.mxu0 0
    %1495 = vmatpush1.bf16.msra.mxu0 0
    %1496 = vmatprep.subr.bf16.mxu0 0
    %1497 = vmatpush1.bf16.msra.mxu0 0
    %1498 = vmatprep.subr.bf16.mxu0 0
    %1499 = vmatpush1.bf16.msra.mxu0 0
    %1500 = vmatprep.subr.bf16.mxu0 0
    %1501 = vmatpush1.bf16.msra.mxu0 0
    %1502 = vmatprep.mubr.bf16.mxu0 %v1468
    %1503 = vmatmul.mubr.bf16.gmra.mrb[0].mxu0 %v1464
    %v1504 = vpop.f32.mrb[0].mxu0
    %v1505 = vadd.f32 0.0, %v1504
    %v1506 = vpop.f32.mrb[0].mxu0
    %v1507 = vadd.f32 0.0, %v1506
    %v1508 = vpop.f32.mrb[0].mxu0
    %v1509 = vpop.f32.mrb[0].mxu0
    %1510 = vdwg.mxu0
    %1511 = vmatprep.subr.bf16.mxu0 %v1406
    %1512 = vmatpush1.bf16.msra.mxu0 %v1405
    %1513 = vmatprep.subr.bf16.mxu0 %v1412
    %1514 = vmatpush1.bf16.msra.mxu0 %v1411
    %1515 = vmatprep.subr.bf16.mxu0 %v1418
    %1516 = vmatpush1.bf16.msra.mxu0 %v1417
    %1517 = vmatprep.subr.bf16.mxu0 %v1424
    %1518 = vmatpush1.bf16.msra.mxu0 %v1423
    %1519 = vmatprep.subr.bf16.mxu0 %v1430
    %1520 = vmatpush1.bf16.msra.mxu0 %v1429
    %1521 = vmatprep.subr.bf16.mxu0 %v1436
    %1522 = vmatpush1.bf16.msra.mxu0 %v1435
    %1523 = vmatprep.subr.bf16.mxu0 %v1442
    %1524 = vmatpush1.bf16.msra.mxu0 %v1441
    %1525 = vmatprep.subr.bf16.mxu0 %v1448
    %1526 = vmatpush1.bf16.msra.mxu0 %v1447
    %1527 = vmatprep.subr.bf16.mxu0 %v1454
    %1528 = vmatpush1.bf16.msra.mxu0 %v1453
    %1529 = vmatprep.subr.bf16.mxu0 0
    %1530 = vmatpush1.bf16.msra.mxu0 0
    %1531 = vmatprep.subr.bf16.mxu0 0
    %1532 = vmatpush1.bf16.msra.mxu0 0
    %1533 = vmatprep.subr.bf16.mxu0 0
    %1534 = vmatpush1.bf16.msra.mxu0 0
    %1535 = vmatprep.subr.bf16.mxu0 0
    %1536 = vmatpush1.bf16.msra.mxu0 0
    %1537 = vmatprep.subr.bf16.mxu0 0
    %1538 = vmatpush1.bf16.msra.mxu0 0
    %1539 = vmatprep.subr.bf16.mxu0 0
    %1540 = vmatpush1.bf16.msra.mxu0 0
    %1541 = vmatprep.subr.bf16.mxu0 0
    %1542 = vmatpush1.bf16.msra.mxu0 0
    %1543 = vmatprep.mubr.bf16.mxu0 %v1468
    %1544 = vmatmul.mubr.bf16.gmra.mrb[0].mxu0 %v1464
    %v1545 = vpop.f32.mrb[0].mxu0
    %v1546 = vadd.f32 0.0, %v1545
    %v1547 = vpop.f32.mrb[0].mxu0
    %v1548 = vadd.f32 0.0, %v1547
    %v1549 = vpop.f32.mrb[0].mxu0
    %v1550 = vpop.f32.mrb[0].mxu0
    %1551 = vdwg.mxu0
    %1552 = vmatprep.subr.bf16.mxu0 %v1408
    %1553 = vmatpush1.bf16.msra.mxu0 %v1407
    %1554 = vmatprep.subr.bf16.mxu0 %v1414
    %1555 = vmatpush1.bf16.msra.mxu0 %v1413
    %1556 = vmatprep.subr.bf16.mxu0 %v1420
    %1557 = vmatpush1.bf16.msra.mxu0 %v1419
    %1558 = vmatprep.subr.bf16.mxu0 %v1426
    %1559 = vmatpush1.bf16.msra.mxu0 %v1425
    %1560 = vmatprep.subr.bf16.mxu0 %v1432
    %1561 = vmatpush1.bf16.msra.mxu0 %v1431
    %1562 = vmatprep.subr.bf16.mxu0 %v1438
    %1563 = vmatpush1.bf16.msra.mxu0 %v1437
    %1564 = vmatprep.subr.bf16.mxu0 %v1444
    %1565 = vmatpush1.bf16.msra.mxu0 %v1443
    %1566 = vmatprep.subr.bf16.mxu0 %v1450
    %1567 = vmatpush1.bf16.msra.mxu0 %v1449
    %1568 = vmatprep.subr.bf16.mxu0 %v1456
    %1569 = vmatpush1.bf16.msra.mxu0 %v1455
    %1570 = vmatprep.subr.bf16.mxu0 0
    %1571 = vmatpush1.bf16.msra.mxu0 0
    %1572 = vmatprep.subr.bf16.mxu0 0
    %1573 = vmatpush1.bf16.msra.mxu0 0
    %1574 = vmatprep.subr.bf16.mxu0 0
    %1575 = vmatpush1.bf16.msra.mxu0 0
    %1576 = vmatprep.subr.bf16.mxu0 0
    %1577 = vmatpush1.bf16.msra.mxu0 0
    %1578 = vmatprep.subr.bf16.mxu0 0
    %1579 = vmatpush1.bf16.msra.mxu0 0
    %1580 = vmatprep.subr.bf16.mxu0 0
    %1581 = vmatpush1.bf16.msra.mxu0 0
    %1582 = vmatprep.subr.bf16.mxu0 0
    %1583 = vmatpush1.bf16.msra.mxu0 0
    %1584 = vmatprep.mubr.bf16.mxu0 %v1468
    %1585 = vmatmul.mubr.bf16.gmra.mrb[0].mxu0 %v1464
    %v1586 = vpop.f32.mrb[0].mxu0
    %v1587 = vadd.f32 0.0, %v1586
    %v1588 = vpop.f32.mrb[0].mxu0
    %v1589 = vadd.f32 0.0, %v1588
    %v1590 = vpop.f32.mrb[0].mxu0
    %v1591 = vpop.f32.mrb[0].mxu0
    %1592 = vdwg.mxu0
    %v1593 = vmul.f32 %v1505, %v717
    %v1594 = vmul.f32 %v1507, %v721
    %v1595 = vmul.f32 %v1546, %v725
    %v1596 = vmul.f32 %v1548, %v729
    %v1597 = vmul.f32 %v1587, %v733
    %v1598 = vmul.f32 %v1589, %v737
    %v1599 = vsel %vm750, %v1593, 0.0
    %v1600 = vsel %vm750, %v1594, 0.0
    %v1601 = vadd.f32 %v1599, %v1600
    %v1602 = vsel %vm750, %v1595, 0.0
    %v1603 = vadd.f32 %v1601, %v1602
    %v1604 = vsel %vm750, %v1596, 0.0
    %v1605 = vadd.f32 %v1603, %v1604
    %v1606 = vsel %vm750, %v1597, 0.0
    %v1607 = vadd.f32 %v1605, %v1606
    %v1608 = vsel %vm146, %v1598, 0.0
    %v1609 = vadd.f32 %v1607, %v1608
    %1610 = vadd.xlane.f32.xlu0 %v1609
    %v1611 = vpop.xlane.xlu0 %1610
    %v1612 = vmul.f32 %v1505, %v1593
    %v1613 = vmul.f32 %v1507, %v1594
    %v1614 = vmul.f32 %v1546, %v1595
    %v1615 = vmul.f32 %v1548, %v1596
    %v1616 = vmul.f32 %v1587, %v1597
    %v1617 = vmul.f32 %v1589, %v1598
    %v1618 = vsel %vm750, %v1612, 0.0
    %v1619 = vsel %vm750, %v1613, 0.0
    %v1620 = vadd.f32 %v1618, %v1619
    %v1621 = vsel %vm750, %v1614, 0.0
    %v1622 = vadd.f32 %v1620, %v1621
    %v1623 = vsel %vm750, %v1615, 0.0
    %v1624 = vadd.f32 %v1622, %v1623
    %v1625 = vsel %vm750, %v1616, 0.0
    %v1626 = vadd.f32 %v1624, %v1625
    %v1627 = vsel %vm146, %v1617, 0.0
    %v1628 = vadd.f32 %v1626, %v1627
    %1629 = vadd.xlane.f32.xlu0 %v1628
    %v1630 = vpop.xlane.xlu0 %1629
    %v1631 = vmul.f32 %v1611, 0.001953125
    %v1632 = vmul.f32 %v1630, 0.001953125
    %v1633 = vmul.f32 %v1631, %v1631
    %v1634 = vsub.f32 %v1632, %v1633
    %v1635 = vsub.f32 %v1505, %v1631
    %v1636 = vsub.f32 %v1507, %v1631
    %v1637 = vsub.f32 %v1546, %v1631
    %v1638 = vsub.f32 %v1548, %v1631
    %v1639 = vsub.f32 %v1587, %v1631
    %v1640 = vsub.f32 %v1589, %v1631
    %v1641 = vadd.f32 %v1634, 1e-05
    %v1642 = vrsqrt.pop %v1641
    %v1643 = vmul.f32 %v1635, %v1642
    %v1644 = vmul.f32 %v1636, %v1642
    %v1645 = vmul.f32 %v1637, %v1642
    %v1646 = vmul.f32 %v1638, %v1642
    %v1647 = vmul.f32 %v1639, %v1642
    %v1648 = vmul.f32 %v1640, %v1642
    %v1649 = vld [vmem:[%s6] sm:$0xf]
    %1651 = vset.pattern.permute.xlu0 0
    %1652 = vperm.xlu0 %1651, %v1649
    %v1653 = vpop.permute.xlu0 %1652
    %v1655 = vmul.f32 %v1643, %v1653
    %v1656 = vmul.f32 %v1644, %v1653
    %v1657 = vmul.f32 %v1645, %v1653
    %v1658 = vmul.f32 %v1646, %v1653
    %v1659 = vmul.f32 %v1647, %v1653
    %v1660 = vmul.f32 %v1648, %v1653
    %v1661 = vld [vmem:[%s7] sm:$0xf]
    %1663 = vset.pattern.permute.xlu0 0
    %1664 = vperm.xlu0 %1663, %v1661
    %v1665 = vpop.permute.xlu0 %1664
    %v1667 = vadd.f32 %v1655, %v1665
    %v1668 = vadd.f32 %v1656, %v1665
    %v1669 = vadd.f32 %v1657, %v1665
    %v1670 = vadd.f32 %v1658, %v1665
    %v1671 = vadd.f32 %v1659, %v1665
    %v1672 = vadd.f32 %v1660, %v1665
    %v1673 = vmax.f32 %v1667, 0.0
    %v1674 = vmax.f32 %v1668, 0.0
    %v1675 = vmax.f32 %v1669, 0.0
    %v1676 = vmax.f32 %v1670, 0.0
    %v1677 = vmax.f32 %v1671, 0.0
    %v1678 = vmax.f32 %v1672, 0.0
    %v1685 = vcombine.low %v1673, %v1674
    %v1686 = vcombine.low %v1675, %v1676
    %v1687 = vcombine.low %v1677, %v1678
    %1691 = vst [vmem:[#allocation7] sm:$0xff] %v1685
    %1692 = vst [vmem:[#allocation7 + $0x8] sm:$0xff] %v1686
    %vm1693 = vcmask 64516
    %vm1694 = vmor %vm1693, %vm750
    %1695 = vst.msk [vmem:[#allocation7 + $0x10] sm:$0xff] %vm1694, %v1687
    // Predicated region
    $region38: #{tpu_custom_call.1} parent=1 // pred_check
      _
    $region39: #{tpu_custom_call.1} parent=1 // pred_check_branch
      %1697 = sbr.rel (0) target = $region41
    $region40: #{tpu_custom_call.1} parent=1 // pred_region
      %s1699 = ssub.s32 384, 384
      %1700 = vsyncadd [#allocation6], %s1699
      %s1702 = sshll.u32 [#allocation7], 4
      %s1703 = int_to_ptr.vmem [resolvable:$true] %s1702
      %1705 = dma.vmem_to_hbm [thread:$0]  %s1703, 384, %s8, [#allocation6]
    $region41: #{tpu_custom_call.1} parent=1 // pred_fallthru
      _
    // Predicated region
    $region42: #{tpu_custom_call.1} parent=1 // pred_check
      _
    $region43: #{tpu_custom_call.1} parent=1 // pred_check_branch
      %1707 = sbr.rel (0) target = $region45
    $region44: #{tpu_custom_call.1} parent=1 // pred_region
      %1708 = dma.done [#allocation6], 384
    $region45: #{tpu_custom_call.1} parent=1 // pred_fallthru
      _
    %1709 = vsyncpa [#allocation5], 1
    %1710 = vsyncpa [#allocation6], 1

</llo_original>
